<compile_context>
chip_gen: v7x
topology: tpu7x:2x2x1
jax: 0.10.0
libtpu: 0.0.40
codegen_flags: <defaults>
</compile_context>

<pallas_src>
import jax
import jax.numpy as jnp
from jax import lax
from jax.experimental import pallas as pl
from jax.experimental.pallas import tpu as pltpu


def _round_up(v, m):
    return (v + m - 1) // m * m


def _conv3_relu(x, w_ref, b_ref, lane_idx):
    """3-tap 'same' Conv1d + ReLU on a (C, L) tile.

    x:        (C, L) f32 tile
    w_ref:    (3, C, C) ref, w_ref[k][co, ci] = W_torch[co, ci, k]
    b_ref:    (C, 1) ref
    lane_idx: (C, L) int32 iota along L (hoisted by caller)
    out[co,l] = relu(b[co] + sum_ci W[co,ci,0]*x[ci,l-1] + W[co,ci,1]*x[ci,l]
                              + W[co,ci,2]*x[ci,l+1])        (zero padding at both ends)
    """
    _, L = x.shape
    # Shifted taps: XLU roll (positive shift) + one VPU select to zero the wrapped column.
    x_m1 = jnp.where(lane_idx == 0, 0.0, pltpu.roll(x, shift=1, axis=1))        # x[:, l-1]
    x_p1 = jnp.where(lane_idx == L - 1, 0.0, pltpu.roll(x, shift=L - 1, axis=1))  # x[:, l+1]
    # Three accumulating MXU matmuls; no (3C, L) staging tensor.
    acc = jnp.dot(w_ref[0], x_m1, preferred_element_type=jnp.float32)
    acc = acc + jnp.dot(w_ref[1], x, preferred_element_type=jnp.float32)
    acc = acc + jnp.dot(w_ref[2], x_p1, preferred_element_type=jnp.float32)
    return jnp.maximum(acc + b_ref[...], 0.0)


def _make_kernel(tb, l_valid, l_pad):
    """Kernel over one (tb, Cp, Lp) batch block; l_valid <= l_pad is the true length."""

    def kernel(x_ref, w1_ref, b1_ref, w2_ref, b2_ref, o_ref):
        cp = x_ref.shape[1]
        lp = x_ref.shape[2]
        lane_idx = lax.broadcasted_iota(jnp.int32, (cp, lp), 1)  # hoisted, once per step

        def process(b):
            x = x_ref[b]                                          # (Cp, Lp)
            h = _conv3_relu(x, w1_ref, b1_ref, lane_idx)          # conv1 + ReLU
            if l_pad != l_valid:
                # Re-zero padded columns so conv2's boundary sees true zero padding.
                h = jnp.where(lane_idx < l_valid, h, 0.0)
            y = _conv3_relu(h, w2_ref, b2_ref, lane_idx)          # conv2 + ReLU
            o_ref[b] = (y + x).astype(o_ref.dtype)                # residual add

        if tb <= 8:
            for b in range(tb):          # small, bounded unroll (LLO scheduler visibility)
                process(b)
        else:
            @pl.loop(0, tb)              # scf.for: trace size independent of tb
            def _(b):
                process(b)

    return kernel


def resblock_pallas(x_ncl, w1, b1, w2, b2, *, target_block_bytes=8 * 1024 * 1024):
    """x_ncl: (N, C, L) float32; w*: (C, C, 3) torch Conv1d weights; b*: (C,)."""
    N, C, L = x_ncl.shape

    # --- pad shapes to TPU-friendly sizes: C -> mult of 8 (sublane), L -> mult of 128 (lane)
    Cp = _round_up(C, 8)
    Lp = _round_up(max(L, 1), 128)

    # --- block sizing against real VMEM capacity -----------------------------------
    elem_bytes = 4 * Cp * Lp                       # one batch element, f32
    w_bytes = 3 * Cp * Cp * 4                      # one conv weight resident in VMEM
    b_bytes = Cp * 128 * 4                         # bias, lane-padded
    fixed_bytes = 2 * 2 * (w_bytes + b_bytes)      # 2 convs, worst-case double buffered

    try:
        vmem_cap = int(pltpu.get_tpu_info().vmem_capacity_bytes)
    except Exception:
        vmem_cap = 64 * 1024 * 1024                # v7x per-core size: safe lower bound
    vmem_budget = int(0.75 * vmem_cap)             # headroom for compiler scratch/sems

    # 2x-double-buffered in+out blocks (4x) plus ~2x block of in-kernel temporaries.
    max_block_bytes = max(elem_bytes, (vmem_budget - fixed_bytes - (2 << 20)) // 6)
    block_bytes = min(target_block_bytes, max_block_bytes)
    tb = max(1, min(block_bytes // elem_bytes, 64, N))
    if N >= 2:
        tb = min(tb, (N + 1) // 2)                 # >=2 grid steps -> both v7x TCs busy

    n_blocks = -(-N // tb)                         # cdiv; pad N rather than shrinking tb
    Np = n_blocks * tb

    # --- operand prep ---------------------------------------------------------------
    x_p = x_ncl.astype(jnp.float32)
    if (Np, Cp, Lp) != (N, C, L):
        x_p = jnp.pad(x_p, ((0, Np - N), (0, Cp - C), (0, Lp - L)))

    def prep_w(w):
        w = w.astype(jnp.float32)
        if Cp != C:
            w = jnp.pad(w, ((0, Cp - C), (0, Cp - C), (0, 0)))
        return jnp.transpose(w, (2, 0, 1))         # (3, Cp, Cp); [k] = W[:, :, k]

    def prep_b(b):
        b = b.astype(jnp.float32)
        if Cp != C:
            b = jnp.pad(b, ((0, Cp - C),))
        return b.reshape(Cp, 1)

    w1_k, w2_k = prep_w(w1), prep_w(w2)
    b1_k, b2_k = prep_b(b1), prep_b(b2)

    # Explicit footprint-derived VMEM limit (never the full physical VMEM).
    vmem_limit = 4 * tb * elem_bytes + fixed_bytes + 2 * elem_bytes + (4 << 20)
    vmem_limit = int(min(max(vmem_limit, 16 * 1024 * 1024), vmem_budget))

    kernel = _make_kernel(tb, L, Lp)

    def call(single_buffer_weights):
        const_kwargs = {}
        if single_buffer_weights:
            # Grid-invariant operands: a single buffer is enough (index never changes).
            const_kwargs = dict(pipeline_mode=pl.Buffered(1))
        grid_spec = pltpu.PrefetchScalarGridSpec(
            num_scalar_prefetch=0,
            grid=(n_blocks,),
            in_specs=[
                pl.BlockSpec((tb, Cp, Lp), lambda n: (n, 0, 0)),
                pl.BlockSpec((3, Cp, Cp), lambda n: (0, 0, 0), **const_kwargs),
                pl.BlockSpec((Cp, 1), lambda n: (0, 0), **const_kwargs),
                pl.BlockSpec((3, Cp, Cp), lambda n: (0, 0, 0), **const_kwargs),
                pl.BlockSpec((Cp, 1), lambda n: (0, 0), **const_kwargs),
            ],
            out_specs=pl.BlockSpec((tb, Cp, Lp), lambda n: (n, 0, 0)),
        )
        return pl.pallas_call(
            kernel,
            out_shape=jax.ShapeDtypeStruct((Np, Cp, Lp), jnp.float32),
            grid_spec=grid_spec,
            compiler_params=pltpu.CompilerParams(
                dimension_semantics=("parallel",),
                vmem_limit_bytes=vmem_limit),
        )(x_p, w1_k, b1_k, w2_k, b2_k)

    try:
        out = call(True)
    except Exception:
        # pipeline_mode/Buffered(1) unsupported in this JAX build -> default buffering.
        out = call(False)

    if (Np, Cp, Lp) != (N, C, L):
        out = out[:N, :C, :L]
    return out


def resblock_ref(x_ncl, w1, b1, w2, b2):
    """Pure-JAX reference mirroring the PyTorch forward exactly."""
    def conv(x, w, b):
        y = lax.conv_general_dilated(
            x, w, window_strides=(1,), padding=((1, 1),),
            dimension_numbers=("NCH", "OIH", "NCH"),
            precision=lax.Precision.HIGHEST)
        return y + b[None, :, None]
    h = jnp.maximum(conv(x_ncl, w1, b1), 0.0)
    y = jnp.maximum(conv(h, w2, b2), 0.0)
    return y + x_ncl


if __name__ == "__main__":
    N, C, L = 2, 8, 128           # batch, dim (channels), sequence length
    key = jax.random.PRNGKey(0)
    kx, kw1, kb1, kw2, kb2 = jax.random.split(key, 5)

    x = jax.random.normal(kx, (N, C, L), dtype=jnp.float32)

    # Deterministic xavier_uniform init (gain('linear')==1), torch Conv1d layout (C_out, C_in, K)
    fan_in = C * 3
    fan_out = C * 3
    limit = (6.0 / (fan_in + fan_out)) ** 0.5
    w1 = jax.random.uniform(kw1, (C, C, 3), jnp.float32, -limit, limit)
    w2 = jax.random.uniform(kw2, (C, C, 3), jnp.float32, -limit, limit)
    # torch default Conv1d bias init: U(-1/sqrt(fan_in), 1/sqrt(fan_in))
    blim = 1.0 / (fan_in ** 0.5)
    b1 = jax.random.uniform(kb1, (C,), jnp.float32, -blim, blim)
    b2 = jax.random.uniform(kb2, (C,), jnp.float32, -blim, blim)

    out = jax.block_until_ready(resblock_pallas(x, w1, b1, w2, b2))

    ref = resblock_ref(x, w1, b1, w2, b2)
    assert out.shape == (N, C, L)
    assert jnp.allclose(out, ref, rtol=1e-3, atol=1e-3), "mismatch vs reference"

    print("KERNEL_OK")
</pallas_src>

<mosaic_0001>
module attributes {stable_mosaic.version = 11 : i64} {
  func.func @kernel(%arg0: i32, %arg1: memref<1x8x128xf32, #tpu.memory_space<vmem>>, %arg2: memref<3x8x8xf32, #tpu.memory_space<vmem>>, %arg3: memref<8x1xf32, #tpu.memory_space<vmem>>, %arg4: memref<3x8x8xf32, #tpu.memory_space<vmem>>, %arg5: memref<8x1xf32, #tpu.memory_space<vmem>>, %arg6: memref<1x8x128xf32, #tpu.memory_space<vmem>>) attributes {dimension_semantics = [#tpu.dimension_semantics<parallel>], iteration_bounds = array<i64: 2>, scalar_prefetch = 0 : i64, scratch_operands = 0 : i64, tpu.core_type = #tpu.core_type<tc>, window_params = [{transform_indices = @transform_0, window_bounds = array<i64: 1, 8, 128>}, {pipeline_mode = #tpu.pipeline_mode<synchronous>, transform_indices = @transform_1, window_bounds = array<i64: 3, 8, 8>}, {pipeline_mode = #tpu.pipeline_mode<synchronous>, transform_indices = @transform_2, window_bounds = array<i64: 8, 1>}, {pipeline_mode = #tpu.pipeline_mode<synchronous>, transform_indices = @transform_3, window_bounds = array<i64: 3, 8, 8>}, {pipeline_mode = #tpu.pipeline_mode<synchronous>, transform_indices = @transform_4, window_bounds = array<i64: 8, 1>}, {transform_indices = @transform_5, window_bounds = array<i64: 1, 8, 128>}]} {
    %0 = tpu.iota {dimensions = array<i32: 1>} : vector<8x128xi32>
    %c0 = arith.constant 0 : index
    %c0_0 = arith.constant 0 : index
    %c0_1 = arith.constant 0 : index
    %1 = vector.load %arg1[%c0, %c0_0, %c0_1] : memref<1x8x128xf32, #tpu.memory_space<vmem>>, vector<1x8x128xf32>
    %2 = vector.shape_cast %1 : vector<1x8x128xf32> to vector<8x128xf32>
    %c0_i32 = arith.constant 0 : i32
    %3 = vector.broadcast %c0_i32 : i32 to vector<8x128xi32>
    %4 = arith.cmpi eq, %0, %3 : vector<8x128xi32>
    %c1_i32 = arith.constant 1 : i32
    %5 = tpu.dynamic_rotate %2 by %c1_i32 dim 1 : vector<8x128xf32>, i32 -> vector<8x128xf32>
    %cst = arith.constant 0.000000e+00 : f32
    %6 = vector.broadcast %cst : f32 to vector<8x128xf32>
    %7 = arith.select %4, %6, %5 : vector<8x128xi1>, vector<8x128xf32>
    %c127_i32 = arith.constant 127 : i32
    %8 = vector.broadcast %c127_i32 : i32 to vector<8x128xi32>
    %9 = arith.cmpi eq, %0, %8 : vector<8x128xi32>
    %c127_i32_2 = arith.constant 127 : i32
    %10 = tpu.dynamic_rotate %2 by %c127_i32_2 dim 1 : vector<8x128xf32>, i32 -> vector<8x128xf32>
    %cst_3 = arith.constant 0.000000e+00 : f32
    %11 = vector.broadcast %cst_3 : f32 to vector<8x128xf32>
    %12 = arith.select %9, %11, %10 : vector<8x128xi1>, vector<8x128xf32>
    %c0_4 = arith.constant 0 : index
    %c0_5 = arith.constant 0 : index
    %c0_6 = arith.constant 0 : index
    %13 = vector.load %arg2[%c0_4, %c0_5, %c0_6] : memref<3x8x8xf32, #tpu.memory_space<vmem>>, vector<1x8x8xf32>
    %14 = vector.shape_cast %13 : vector<1x8x8xf32> to vector<8x8xf32>
    %cst_7 = arith.constant dense<0.000000e+00> : vector<8x128xf32>
    %15 = tpu.matmul %14, %7, %cst_7 {dimension_numbers = #tpu.dot_dimension_numbers<[1], [0], [0], [1], [0, 0, 1, 1], [], []>} : vector<8x8xf32>, vector<8x128xf32>, vector<8x128xf32> -> vector<8x128xf32>
    %c1 = arith.constant 1 : index
    %c0_8 = arith.constant 0 : index
    %c0_9 = arith.constant 0 : index
    %16 = vector.load %arg2[%c1, %c0_8, %c0_9] : memref<3x8x8xf32, #tpu.memory_space<vmem>>, vector<1x8x8xf32>
    %17 = vector.shape_cast %16 : vector<1x8x8xf32> to vector<8x8xf32>
    %cst_10 = arith.constant dense<0.000000e+00> : vector<8x128xf32>
    %18 = tpu.matmul %17, %2, %cst_10 {dimension_numbers = #tpu.dot_dimension_numbers<[1], [0], [0], [1], [0, 0, 1, 1], [], []>} : vector<8x8xf32>, vector<8x128xf32>, vector<8x128xf32> -> vector<8x128xf32>
    %19 = arith.addf %15, %18 : vector<8x128xf32>
    %c2 = arith.constant 2 : index
    %c0_11 = arith.constant 0 : index
    %c0_12 = arith.constant 0 : index
    %20 = vector.load %arg2[%c2, %c0_11, %c0_12] : memref<3x8x8xf32, #tpu.memory_space<vmem>>, vector<1x8x8xf32>
    %21 = vector.shape_cast %20 : vector<1x8x8xf32> to vector<8x8xf32>
    %cst_13 = arith.constant dense<0.000000e+00> : vector<8x128xf32>
    %22 = tpu.matmul %21, %12, %cst_13 {dimension_numbers = #tpu.dot_dimension_numbers<[1], [0], [0], [1], [0, 0, 1, 1], [], []>} : vector<8x8xf32>, vector<8x128xf32>, vector<8x128xf32> -> vector<8x128xf32>
    %23 = arith.addf %19, %22 : vector<8x128xf32>
    %c0_14 = arith.constant 0 : index
    %c0_15 = arith.constant 0 : index
    %24 = vector.load %arg3[%c0_14, %c0_15] : memref<8x1xf32, #tpu.memory_space<vmem>>, vector<8x1xf32>
    %25 = vector.broadcast %24 : vector<8x1xf32> to vector<8x128xf32>
    %26 = arith.addf %23, %25 : vector<8x128xf32>
    %cst_16 = arith.constant 0.000000e+00 : f32
    %27 = vector.broadcast %cst_16 : f32 to vector<8x128xf32>
    %28 = arith.maximumf %26, %27 : vector<8x128xf32>
    %c0_i32_17 = arith.constant 0 : i32
    %29 = vector.broadcast %c0_i32_17 : i32 to vector<8x128xi32>
    %30 = arith.cmpi eq, %0, %29 : vector<8x128xi32>
    %c1_i32_18 = arith.constant 1 : i32
    %31 = tpu.dynamic_rotate %28 by %c1_i32_18 dim 1 : vector<8x128xf32>, i32 -> vector<8x128xf32>
    %cst_19 = arith.constant 0.000000e+00 : f32
    %32 = vector.broadcast %cst_19 : f32 to vector<8x128xf32>
    %33 = arith.select %30, %32, %31 : vector<8x128xi1>, vector<8x128xf32>
    %c127_i32_20 = arith.constant 127 : i32
    %34 = vector.broadcast %c127_i32_20 : i32 to vector<8x128xi32>
    %35 = arith.cmpi eq, %0, %34 : vector<8x128xi32>
    %c127_i32_21 = arith.constant 127 : i32
    %36 = tpu.dynamic_rotate %28 by %c127_i32_21 dim 1 : vector<8x128xf32>, i32 -> vector<8x128xf32>
    %cst_22 = arith.constant 0.000000e+00 : f32
    %37 = vector.broadcast %cst_22 : f32 to vector<8x128xf32>
    %38 = arith.select %35, %37, %36 : vector<8x128xi1>, vector<8x128xf32>
    %c0_23 = arith.constant 0 : index
    %c0_24 = arith.constant 0 : index
    %c0_25 = arith.constant 0 : index
    %39 = vector.load %arg4[%c0_23, %c0_24, %c0_25] : memref<3x8x8xf32, #tpu.memory_space<vmem>>, vector<1x8x8xf32>
    %40 = vector.shape_cast %39 : vector<1x8x8xf32> to vector<8x8xf32>
    %cst_26 = arith.constant dense<0.000000e+00> : vector<8x128xf32>
    %41 = tpu.matmul %40, %33, %cst_26 {dimension_numbers = #tpu.dot_dimension_numbers<[1], [0], [0], [1], [0, 0, 1, 1], [], []>} : vector<8x8xf32>, vector<8x128xf32>, vector<8x128xf32> -> vector<8x128xf32>
    %c1_27 = arith.constant 1 : index
    %c0_28 = arith.constant 0 : index
    %c0_29 = arith.constant 0 : index
    %42 = vector.load %arg4[%c1_27, %c0_28, %c0_29] : memref<3x8x8xf32, #tpu.memory_space<vmem>>, vector<1x8x8xf32>
    %43 = vector.shape_cast %42 : vector<1x8x8xf32> to vector<8x8xf32>
    %cst_30 = arith.constant dense<0.000000e+00> : vector<8x128xf32>
    %44 = tpu.matmul %43, %28, %cst_30 {dimension_numbers = #tpu.dot_dimension_numbers<[1], [0], [0], [1], [0, 0, 1, 1], [], []>} : vector<8x8xf32>, vector<8x128xf32>, vector<8x128xf32> -> vector<8x128xf32>
    %45 = arith.addf %41, %44 : vector<8x128xf32>
    %c2_31 = arith.constant 2 : index
    %c0_32 = arith.constant 0 : index
    %c0_33 = arith.constant 0 : index
    %46 = vector.load %arg4[%c2_31, %c0_32, %c0_33] : memref<3x8x8xf32, #tpu.memory_space<vmem>>, vector<1x8x8xf32>
    %47 = vector.shape_cast %46 : vector<1x8x8xf32> to vector<8x8xf32>
    %cst_34 = arith.constant dense<0.000000e+00> : vector<8x128xf32>
    %48 = tpu.matmul %47, %38, %cst_34 {dimension_numbers = #tpu.dot_dimension_numbers<[1], [0], [0], [1], [0, 0, 1, 1], [], []>} : vector<8x8xf32>, vector<8x128xf32>, vector<8x128xf32> -> vector<8x128xf32>
    %49 = arith.addf %45, %48 : vector<8x128xf32>
    %c0_35 = arith.constant 0 : index
    %c0_36 = arith.constant 0 : index
    %50 = vector.load %arg5[%c0_35, %c0_36] : memref<8x1xf32, #tpu.memory_space<vmem>>, vector<8x1xf32>
    %51 = vector.broadcast %50 : vector<8x1xf32> to vector<8x128xf32>
    %52 = arith.addf %49, %51 : vector<8x128xf32>
    %cst_37 = arith.constant 0.000000e+00 : f32
    %53 = vector.broadcast %cst_37 : f32 to vector<8x128xf32>
    %54 = arith.maximumf %52, %53 : vector<8x128xf32>
    %55 = arith.addf %54, %2 : vector<8x128xf32>
    %c0_38 = arith.constant 0 : index
    %c0_39 = arith.constant 0 : index
    %c0_40 = arith.constant 0 : index
    %56 = vector.load %arg6[%c0_38, %c0_39, %c0_40] : memref<1x8x128xf32, #tpu.memory_space<vmem>>, vector<1x8x128xf32>
    %57 = vector.shape_cast %56 : vector<1x8x128xf32> to vector<8x128xf32>
    %58 = vector.shape_cast %55 : vector<8x128xf32> to vector<1x8x128xf32>
    tpu.vector_store %arg6[%c0_38, %c0_39, %c0_40], %58 {strides = array<i32>} : memref<1x8x128xf32, #tpu.memory_space<vmem>>, vector<1x8x128xf32>,
    return
  }
  func.func @transform_0(%arg0: i32) -> (i32, i32, i32) {
    %c0_i32 = arith.constant 0 : i32
    %c0_i32_0 = arith.constant 0 : i32
    %c0_i32_1 = arith.constant 0 : i32
    return %arg0, %c0_i32, %c0_i32_0 : i32, i32, i32
  }
  func.func @transform_1(%arg0: i32) -> (i32, i32, i32) {
    %c0_i32 = arith.constant 0 : i32
    %c0_i32_0 = arith.constant 0 : i32
    %c0_i32_1 = arith.constant 0 : i32
    %c0_i32_2 = arith.constant 0 : i32
    return %c0_i32, %c0_i32_0, %c0_i32_1 : i32, i32, i32
  }
  func.func @transform_2(%arg0: i32) -> (i32, i32) {
    %c0_i32 = arith.constant 0 : i32
    %c0_i32_0 = arith.constant 0 : i32
    %c0_i32_1 = arith.constant 0 : i32
    return %c0_i32, %c0_i32_0 : i32, i32
  }
  func.func @transform_3(%arg0: i32) -> (i32, i32, i32) {
    %c0_i32 = arith.constant 0 : i32
    %c0_i32_0 = arith.constant 0 : i32
    %c0_i32_1 = arith.constant 0 : i32
    %c0_i32_2 = arith.constant 0 : i32
    return %c0_i32, %c0_i32_0, %c0_i32_1 : i32, i32, i32
  }
  func.func @transform_4(%arg0: i32) -> (i32, i32) {
    %c0_i32 = arith.constant 0 : i32
    %c0_i32_0 = arith.constant 0 : i32
    %c0_i32_1 = arith.constant 0 : i32
    return %c0_i32, %c0_i32_0 : i32, i32
  }
  func.func @transform_5(%arg0: i32) -> (i32, i32, i32) {
    %c0_i32 = arith.constant 0 : i32
    %c0_i32_0 = arith.constant 0 : i32
    %c0_i32_1 = arith.constant 0 : i32
    return %arg0, %c0_i32, %c0_i32_0 : i32, i32, i32
  }
}

module attributes {stable_mosaic.version = 11 : i64} {
  func.func @kernel(%arg0: i32, %arg1: memref<1x8x128xf32, #tpu.memory_space<vmem>>, %arg2: memref<3x8x8xf32, #tpu.memory_space<vmem>>, %arg3: memref<8x1xf32, #tpu.memory_space<vmem>>, %arg4: memref<3x8x8xf32, #tpu.memory_space<vmem>>, %arg5: memref<8x1xf32, #tpu.memory_space<vmem>>, %arg6: memref<1x8x128xf32, #tpu.memory_space<vmem>>) attributes {dimension_semantics = [#tpu.dimension_semantics<parallel>], iteration_bounds = array<i64: 2>, scalar_prefetch = 0 : i64, scratch_operands = 0 : i64, tpu.core_type = #tpu.core_type<tc>, window_params = [{transform_indices = @transform_0, window_bounds = array<i64: 1, 8, 128>}, {pipeline_mode = #tpu.pipeline_mode<synchronous>, transform_indices = @transform_1, window_bounds = array<i64: 3, 8, 8>}, {pipeline_mode = #tpu.pipeline_mode<synchronous>, transform_indices = @transform_2, window_bounds = array<i64: 8, 1>}, {pipeline_mode = #tpu.pipeline_mode<synchronous>, transform_indices = @transform_3, window_bounds = array<i64: 3, 8, 8>}, {pipeline_mode = #tpu.pipeline_mode<synchronous>, transform_indices = @transform_4, window_bounds = array<i64: 8, 1>}, {transform_indices = @transform_5, window_bounds = array<i64: 1, 8, 128>}]} {
    %0 = tpu.iota {dimensions = array<i32: 1>} : vector<8x128xi32>
    %c0 = arith.constant 0 : index
    %c0_0 = arith.constant 0 : index
    %c0_1 = arith.constant 0 : index
    %1 = vector.load %arg1[%c0, %c0_0, %c0_1] : memref<1x8x128xf32, #tpu.memory_space<vmem>>, vector<1x8x128xf32>
    %2 = vector.shape_cast %1 : vector<1x8x128xf32> to vector<8x128xf32>
    %c0_i32 = arith.constant 0 : i32
    %3 = vector.broadcast %c0_i32 : i32 to vector<8x128xi32>
    %4 = arith.cmpi eq, %0, %3 : vector<8x128xi32>
    %c1_i32 = arith.constant 1 : i32
    %5 = tpu.dynamic_rotate %2 by %c1_i32 dim 1 : vector<8x128xf32>, i32 -> vector<8x128xf32>
    %cst = arith.constant 0.000000e+00 : f32
    %6 = vector.broadcast %cst : f32 to vector<8x128xf32>
    %7 = arith.select %4, %6, %5 : vector<8x128xi1>, vector<8x128xf32>
    %c127_i32 = arith.constant 127 : i32
    %8 = vector.broadcast %c127_i32 : i32 to vector<8x128xi32>
    %9 = arith.cmpi eq, %0, %8 : vector<8x128xi32>
    %c127_i32_2 = arith.constant 127 : i32
    %10 = tpu.dynamic_rotate %2 by %c127_i32_2 dim 1 : vector<8x128xf32>, i32 -> vector<8x128xf32>
    %cst_3 = arith.constant 0.000000e+00 : f32
    %11 = vector.broadcast %cst_3 : f32 to vector<8x128xf32>
    %12 = arith.select %9, %11, %10 : vector<8x128xi1>, vector<8x128xf32>
    %c0_4 = arith.constant 0 : index
    %c0_5 = arith.constant 0 : index
    %c0_6 = arith.constant 0 : index
    %13 = vector.load %arg2[%c0_4, %c0_5, %c0_6] : memref<3x8x8xf32, #tpu.memory_space<vmem>>, vector<1x8x8xf32>
    %14 = vector.shape_cast %13 : vector<1x8x8xf32> to vector<8x8xf32>
    %cst_7 = arith.constant dense<0.000000e+00> : vector<8x128xf32>
    %15 = tpu.matmul %14, %7, %cst_7 {dimension_numbers = #tpu.dot_dimension_numbers<[1], [0], [0], [1], [0, 0, 1, 1], [], []>} : vector<8x8xf32>, vector<8x128xf32>, vector<8x128xf32> -> vector<8x128xf32>
    %c1 = arith.constant 1 : index
    %c0_8 = arith.constant 0 : index
    %c0_9 = arith.constant 0 : index
    %16 = vector.load %arg2[%c1, %c0_8, %c0_9] : memref<3x8x8xf32, #tpu.memory_space<vmem>>, vector<1x8x8xf32>
    %17 = vector.shape_cast %16 : vector<1x8x8xf32> to vector<8x8xf32>
    %cst_10 = arith.constant dense<0.000000e+00> : vector<8x128xf32>
    %18 = tpu.matmul %17, %2, %cst_10 {dimension_numbers = #tpu.dot_dimension_numbers<[1], [0], [0], [1], [0, 0, 1, 1], [], []>} : vector<8x8xf32>, vector<8x128xf32>, vector<8x128xf32> -> vector<8x128xf32>
    %19 = arith.addf %15, %18 : vector<8x128xf32>
    %c2 = arith.constant 2 : index
    %c0_11 = arith.constant 0 : index
    %c0_12 = arith.constant 0 : index
    %20 = vector.load %arg2[%c2, %c0_11, %c0_12] : memref<3x8x8xf32, #tpu.memory_space<vmem>>, vector<1x8x8xf32>
    %21 = vector.shape_cast %20 : vector<1x8x8xf32> to vector<8x8xf32>
    %cst_13 = arith.constant dense<0.000000e+00> : vector<8x128xf32>
    %22 = tpu.matmul %21, %12, %cst_13 {dimension_numbers = #tpu.dot_dimension_numbers<[1], [0], [0], [1], [0, 0, 1, 1], [], []>} : vector<8x8xf32>, vector<8x128xf32>, vector<8x128xf32> -> vector<8x128xf32>
    %23 = arith.addf %19, %22 : vector<8x128xf32>
    %c0_14 = arith.constant 0 : index
    %c0_15 = arith.constant 0 : index
    %24 = vector.load %arg3[%c0_14, %c0_15] : memref<8x1xf32, #tpu.memory_space<vmem>>, vector<8x1xf32>
    %25 = vector.broadcast %24 : vector<8x1xf32> to vector<8x128xf32>
    %26 = arith.addf %23, %25 : vector<8x128xf32>
    %cst_16 = arith.constant 0.000000e+00 : f32
    %27 = vector.broadcast %cst_16 : f32 to vector<8x128xf32>
    %28 = arith.maximumf %26, %27 : vector<8x128xf32>
    %c0_i32_17 = arith.constant 0 : i32
    %29 = vector.broadcast %c0_i32_17 : i32 to vector<8x128xi32>
    %30 = arith.cmpi eq, %0, %29 : vector<8x128xi32>
    %c1_i32_18 = arith.constant 1 : i32
    %31 = tpu.dynamic_rotate %28 by %c1_i32_18 dim 1 : vector<8x128xf32>, i32 -> vector<8x128xf32>
    %cst_19 = arith.constant 0.000000e+00 : f32
    %32 = vector.broadcast %cst_19 : f32 to vector<8x128xf32>
    %33 = arith.select %30, %32, %31 : vector<8x128xi1>, vector<8x128xf32>
    %c127_i32_20 = arith.constant 127 : i32
    %34 = vector.broadcast %c127_i32_20 : i32 to vector<8x128xi32>
    %35 = arith.cmpi eq, %0, %34 : vector<8x128xi32>
    %c127_i32_21 = arith.constant 127 : i32
    %36 = tpu.dynamic_rotate %28 by %c127_i32_21 dim 1 : vector<8x128xf32>, i32 -> vector<8x128xf32>
    %cst_22 = arith.constant 0.000000e+00 : f32
    %37 = vector.broadcast %cst_22 : f32 to vector<8x128xf32>
    %38 = arith.select %35, %37, %36 : vector<8x128xi1>, vector<8x128xf32>
    %c0_23 = arith.constant 0 : index
    %c0_24 = arith.constant 0 : index
    %c0_25 = arith.constant 0 : index
    %39 = vector.load %arg4[%c0_23, %c0_24, %c0_25] : memref<3x8x8xf32, #tpu.memory_space<vmem>>, vector<1x8x8xf32>
    %40 = vector.shape_cast %39 : vector<1x8x8xf32> to vector<8x8xf32>
    %cst_26 = arith.constant dense<0.000000e+00> : vector<8x128xf32>
    %41 = tpu.matmul %40, %33, %cst_26 {dimension_numbers = #tpu.dot_dimension_numbers<[1], [0], [0], [1], [0, 0, 1, 1], [], []>} : vector<8x8xf32>, vector<8x128xf32>, vector<8x128xf32> -> vector<8x128xf32>
    %c1_27 = arith.constant 1 : index
    %c0_28 = arith.constant 0 : index
    %c0_29 = arith.constant 0 : index
    %42 = vector.load %arg4[%c1_27, %c0_28, %c0_29] : memref<3x8x8xf32, #tpu.memory_space<vmem>>, vector<1x8x8xf32>
    %43 = vector.shape_cast %42 : vector<1x8x8xf32> to vector<8x8xf32>
    %cst_30 = arith.constant dense<0.000000e+00> : vector<8x128xf32>
    %44 = tpu.matmul %43, %28, %cst_30 {dimension_numbers = #tpu.dot_dimension_numbers<[1], [0], [0], [1], [0, 0, 1, 1], [], []>} : vector<8x8xf32>, vector<8x128xf32>, vector<8x128xf32> -> vector<8x128xf32>
    %45 = arith.addf %41, %44 : vector<8x128xf32>
    %c2_31 = arith.constant 2 : index
    %c0_32 = arith.constant 0 : index
    %c0_33 = arith.constant 0 : index
    %46 = vector.load %arg4[%c2_31, %c0_32, %c0_33] : memref<3x8x8xf32, #tpu.memory_space<vmem>>, vector<1x8x8xf32>
    %47 = vector.shape_cast %46 : vector<1x8x8xf32> to vector<8x8xf32>
    %cst_34 = arith.constant dense<0.000000e+00> : vector<8x128xf32>
    %48 = tpu.matmul %47, %38, %cst_34 {dimension_numbers = #tpu.dot_dimension_numbers<[1], [0], [0], [1], [0, 0, 1, 1], [], []>} : vector<8x8xf32>, vector<8x128xf32>, vector<8x128xf32> -> vector<8x128xf32>
    %49 = arith.addf %45, %48 : vector<8x128xf32>
    %c0_35 = arith.constant 0 : index
    %c0_36 = arith.constant 0 : index
    %50 = vector.load %arg5[%c0_35, %c0_36] : memref<8x1xf32, #tpu.memory_space<vmem>>, vector<8x1xf32>
    %51 = vector.broadcast %50 : vector<8x1xf32> to vector<8x128xf32>
    %52 = arith.addf %49, %51 : vector<8x128xf32>
    %cst_37 = arith.constant 0.000000e+00 : f32
    %53 = vector.broadcast %cst_37 : f32 to vector<8x128xf32>
    %54 = arith.maximumf %52, %53 : vector<8x128xf32>
    %55 = arith.addf %54, %2 : vector<8x128xf32>
    %c0_38 = arith.constant 0 : index
    %c0_39 = arith.constant 0 : index
    %c0_40 = arith.constant 0 : index
    %56 = vector.load %arg6[%c0_38, %c0_39, %c0_40] : memref<1x8x128xf32, #tpu.memory_space<vmem>>, vector<1x8x128xf32>
    %57 = vector.shape_cast %56 : vector<1x8x128xf32> to vector<8x128xf32>
    %58 = vector.shape_cast %55 : vector<8x128xf32> to vector<1x8x128xf32>
    tpu.vector_store %arg6[%c0_38, %c0_39, %c0_40], %58 {strides = array<i32>} : memref<1x8x128xf32, #tpu.memory_space<vmem>>, vector<1x8x128xf32>,
    return
  }
  func.func @transform_0(%arg0: i32) -> (i32, i32, i32) {
    %c0_i32 = arith.constant 0 : i32
    %c0_i32_0 = arith.constant 0 : i32
    %c0_i32_1 = arith.constant 0 : i32
    return %arg0, %c0_i32, %c0_i32_0 : i32, i32, i32
  }
  func.func @transform_1(%arg0: i32) -> (i32, i32, i32) {
    %c0_i32 = arith.constant 0 : i32
    %c0_i32_0 = arith.constant 0 : i32
    %c0_i32_1 = arith.constant 0 : i32
    %c0_i32_2 = arith.constant 0 : i32
    return %c0_i32, %c0_i32_0, %c0_i32_1 : i32, i32, i32
  }
  func.func @transform_2(%arg0: i32) -> (i32, i32) {
    %c0_i32 = arith.constant 0 : i32
    %c0_i32_0 = arith.constant 0 : i32
    %c0_i32_1 = arith.constant 0 : i32
    return %c0_i32, %c0_i32_0 : i32, i32
  }
  func.func @transform_3(%arg0: i32) -> (i32, i32, i32) {
    %c0_i32 = arith.constant 0 : i32
    %c0_i32_0 = arith.constant 0 : i32
    %c0_i32_1 = arith.constant 0 : i32
    %c0_i32_2 = arith.constant 0 : i32
    return %c0_i32, %c0_i32_0, %c0_i32_1 : i32, i32, i32
  }
  func.func @transform_4(%arg0: i32) -> (i32, i32) {
    %c0_i32 = arith.constant 0 : i32
    %c0_i32_0 = arith.constant 0 : i32
    %c0_i32_1 = arith.constant 0 : i32
    return %c0_i32, %c0_i32_0 : i32, i32
  }
  func.func @transform_5(%arg0: i32) -> (i32, i32, i32) {
    %c0_i32 = arith.constant 0 : i32
    %c0_i32_0 = arith.constant 0 : i32
    %c0_i32_1 = arith.constant 0 : i32
    return %arg0, %c0_i32, %c0_i32_0 : i32, i32, i32
  }
}

</mosaic_0001>

<llo_original>
// kernel: tpu_custom_call.1
$region0: #{tpu_custom_call.1}
  #allocation0 [shape = 'u32[]', space=smem, size = 0x4, offset = 0x4, fixed_abs, tag = 'smem constant byte address 0x4 - core index']
  #allocation1 [shape = 'u32[144,128]{1,0:T(1,128)}', space=vmem, size = 0x12000, scoped, tag = 'internal scratch']
  %s0 = inlined_call_operand.hbm [shape: f32[2,8,128], index: 0, kind: input, shape index: {}]
  %s1 = inlined_call_operand.hbm [shape: f32[3,8,8], index: 1, kind: input, shape index: {}]
  %s2 = inlined_call_operand.vmem [shape: f32[8,1], index: 2, kind: input, shape index: {}]
  %s3 = inlined_call_operand.vmem [shape: f32[3,8,8], index: 3, kind: input, shape index: {}]
  %s4 = inlined_call_operand.vmem [shape: f32[8,1], index: 4, kind: input, shape index: {}]
  %s5 = inlined_call_operand.hbm [shape: f32[2,8,128], index: 5, kind: output, shape index: {}]
  %s6 = sld [smem:[#allocation0]]
  $region61: #{tpu_custom_call.1} parent=0
    _
  %s8 = ssub.s32 1, %s6
  %s9 = scalar_select 0, %s8, %s6
  $region1: #{tpu_custom_call.1} parent=0
    #allocation2 [shape = 'u8[8192]{0}', space=vmem, size = 0x2000, scoped, tag = 'input window, operand 0']
    #allocation3 [shape = 's32[2]{0}', space=sflag, size = 0x8, scoped, tag = 'scoped memory for tpu_custom_call.1']
    #allocation4 [shape = 's32[2]{0}', space=sflag, size = 0x8, scoped, tag = 'scoped memory for tpu_custom_call.1']
    #allocation5 [shape = 'u8[12288]{0}', space=vmem, size = 0x3000, scoped, tag = 'input window, operand 1, single buffered']
    #allocation6 [shape = 's32[1]{0}', space=sflag, size = 0x4, scoped, tag = 'scoped memory for tpu_custom_call.1']
    #allocation7 [shape = 'u8[8192]{0}', space=vmem, size = 0x2000, scoped, tag = 'output window, operand 0']
    %10 = vsyncpa [#allocation3], 0
    %s11 = scalar_lea.sflag [#allocation3], 1
    %12 = vsyncpa %s11, 0
    %13 = vsyncpa [#allocation6], 0
    %14 = vsyncpa [#allocation4], 0
    %s15 = scalar_lea.sflag [#allocation4], 1
    %16 = vsyncpa %s15, 0
    loop: start=0, step=1, limit=4
    $region2: #{tpu_custom_call.1} parent=1 // loop_pre_header
      _
    $region3: #{tpu_custom_call.1} parent=1 // loop_header
      %s18 = sphi 0, %s22
      %p19 = scmp.ge.s32.totalorder %s18, 4
      %s28 = sphi 0, %s30
      %s31 = sphi 0, %s28
      %s32 = sphi 0, %s31
      %s48 = sphi 0, %s32
      %s52 = sphi 0, %s52
      %s54 = sphi 0, %s52
      %s55 = sphi 0, %s54
      %s69 = sphi 0, %s55
      %s73 = sphi 0, %s73
      %s75 = sphi 0, %s73
      %s76 = sphi 0, %s75
      %s90 = sphi 0, %s76
      %s94 = sphi 0, %s94
      %s96 = sphi 0, %s94
      %s97 = sphi 0, %s96
      %s111 = sphi 0, %s97
      %s115 = sphi 0, %s115
      %s117 = sphi 0, %s115
      %s118 = sphi 0, %s117
      %s132 = sphi 0, %s118
      %s138 = sphi 0, %s140
      %s141 = sphi 0, %s138
      %s142 = sphi 0, %s141
      %s158 = sphi 0, %s142
    $region4: #{tpu_custom_call.1} parent=1 // loop_header_branch
      %21 = sbr.rel (%p19) target = $region8
    $region5: #{tpu_custom_call.1} parent=1 // loop_body
      %s23 = ssub.s32 %s18, 1
      %s24 = ssub.s32 %s18, 2
      %s25 = sadd.s32 %s18, 1
      %s26 = ssub.s32 %s18, %s25
      %p27 = scmp.eq.s32.totalorder %s26, 0
      %s29 = sadd.s32 %s28, 1
      %s30 = scalar_select %p27, %s28, %s29
      %p33 = pneg %p27
      %p34 = scmp.eq.s32.totalorder %s18, 1
      %p35 = por %p33, %p34
      %p36 = scmp.ne.s32.totalorder %s28, %s31
      %p37 = scmp.eq.s32.totalorder %s18, 0
      %p38 = por %p36, %p37
      %p39 = scmp.ne.s32.totalorder %s28, %s31
      %p40 = scmp.eq.s32.totalorder %s23, 1
      %p41 = por %p39, %p40
      %p42 = scmp.ne.s32.totalorder %s31, %s32
      %p43 = scmp.eq.s32.totalorder %s23, 0
      %p44 = por %p42, %p43
      %p45 = scmp.ne.s32.totalorder %s31, %s32
      %p46 = scmp.eq.s32.totalorder %s24, 1
      %p47 = por %p45, %p46
      %p49 = scmp.ne.s32.totalorder %s32, %s48
      %p50 = scmp.eq.s32.totalorder %s24, 0
      %p51 = por %p49, %p50
      %s53 = sadd.s32 %s52, 1
      %p56 = scmp.eq.s32.totalorder %s18, 1
      %p57 = scmp.ne.s32.totalorder %s52, %s54
      %p58 = scmp.eq.s32.totalorder %s18, 0
      %p59 = por %p57, %p58
      %p60 = scmp.ne.s32.totalorder %s52, %s54
      %p61 = scmp.eq.s32.totalorder %s23, 1
      %p62 = por %p60, %p61
      %p63 = scmp.ne.s32.totalorder %s54, %s55
      %p64 = scmp.eq.s32.totalorder %s23, 0
      %p65 = por %p63, %p64
      %p66 = scmp.ne.s32.totalorder %s54, %s55
      %p67 = scmp.eq.s32.totalorder %s24, 1
      %p68 = por %p66, %p67
      %p70 = scmp.ne.s32.totalorder %s55, %s69
      %p71 = scmp.eq.s32.totalorder %s24, 0
      %p72 = por %p70, %p71
      %s74 = sadd.s32 %s73, 1
      %p77 = scmp.eq.s32.totalorder %s18, 1
      %p78 = scmp.ne.s32.totalorder %s73, %s75
      %p79 = scmp.eq.s32.totalorder %s18, 0
      %p80 = por %p78, %p79
      %p81 = scmp.ne.s32.totalorder %s73, %s75
      %p82 = scmp.eq.s32.totalorder %s23, 1
      %p83 = por %p81, %p82
      %p84 = scmp.ne.s32.totalorder %s75, %s76
      %p85 = scmp.eq.s32.totalorder %s23, 0
      %p86 = por %p84, %p85
      %p87 = scmp.ne.s32.totalorder %s75, %s76
      %p88 = scmp.eq.s32.totalorder %s24, 1
      %p89 = por %p87, %p88
      %p91 = scmp.ne.s32.totalorder %s76, %s90
      %p92 = scmp.eq.s32.totalorder %s24, 0
      %p93 = por %p91, %p92
      %s95 = sadd.s32 %s94, 1
      %p98 = scmp.eq.s32.totalorder %s18, 1
      %p99 = scmp.ne.s32.totalorder %s94, %s96
      %p100 = scmp.eq.s32.totalorder %s18, 0
      %p101 = por %p99, %p100
      %p102 = scmp.ne.s32.totalorder %s94, %s96
      %p103 = scmp.eq.s32.totalorder %s23, 1
      %p104 = por %p102, %p103
      %p105 = scmp.ne.s32.totalorder %s96, %s97
      %p106 = scmp.eq.s32.totalorder %s23, 0
      %p107 = por %p105, %p106
      %p108 = scmp.ne.s32.totalorder %s96, %s97
      %p109 = scmp.eq.s32.totalorder %s24, 1
      %p110 = por %p108, %p109
      %p112 = scmp.ne.s32.totalorder %s97, %s111
      %p113 = scmp.eq.s32.totalorder %s24, 0
      %p114 = por %p112, %p113
      %s116 = sadd.s32 %s115, 1
      %p119 = scmp.eq.s32.totalorder %s18, 1
      %p120 = scmp.ne.s32.totalorder %s115, %s117
      %p121 = scmp.eq.s32.totalorder %s18, 0
      %p122 = por %p120, %p121
      %p123 = scmp.ne.s32.totalorder %s115, %s117
      %p124 = scmp.eq.s32.totalorder %s23, 1
      %p125 = por %p123, %p124
      %p126 = scmp.ne.s32.totalorder %s117, %s118
      %p127 = scmp.eq.s32.totalorder %s23, 0
      %p128 = por %p126, %p127
      %p129 = scmp.ne.s32.totalorder %s117, %s118
      %p130 = scmp.eq.s32.totalorder %s24, 1
      %p131 = por %p129, %p130
      %p133 = scmp.ne.s32.totalorder %s118, %s132
      %p134 = scmp.eq.s32.totalorder %s24, 0
      %p135 = por %p133, %p134
      %s136 = ssub.s32 %s18, %s25
      %p137 = scmp.eq.s32.totalorder %s136, 0
      %s139 = sadd.s32 %s138, 1
      %s140 = scalar_select %p137, %s138, %s139
      %p143 = pneg %p137
      %p144 = scmp.eq.s32.totalorder %s18, 1
      %p145 = por %p143, %p144
      %p146 = scmp.ne.s32.totalorder %s138, %s141
      %p147 = scmp.eq.s32.totalorder %s18, 0
      %p148 = por %p146, %p147
      %p149 = scmp.ne.s32.totalorder %s138, %s141
      %p150 = scmp.eq.s32.totalorder %s23, 1
      %p151 = por %p149, %p150
      %p152 = scmp.ne.s32.totalorder %s141, %s142
      %p153 = scmp.eq.s32.totalorder %s23, 0
      %p154 = por %p152, %p153
      %p155 = scmp.ne.s32.totalorder %s141, %s142
      %p156 = scmp.eq.s32.totalorder %s24, 1
      %p157 = por %p155, %p156
      %p159 = scmp.ne.s32.totalorder %s142, %s158
      %p160 = scmp.eq.s32.totalorder %s24, 0
      %p161 = por %p159, %p160
      %p162 = scmp.le.s32.totalorder 1, %s18
      %p163 = scmp.lt.s32.totalorder %s18, 3
      %p164 = pnand %p162, %p163
      %p165 = pneg %p164
      // Predicated region
      $region9: #{tpu_custom_call.1} parent=5 // pred_check
        _
      $region10: #{tpu_custom_call.1} parent=5 // pred_check_branch
        %167 = sbr.rel (%p164) target = $region12
      $region11: #{tpu_custom_call.1} parent=5 // pred_region
        %s168 = ssub.s32 %s18, 1
        // Predicated region
        $region13: #{tpu_custom_call.1} parent=11 // pred_check
          %p169 = pneg %p65
        $region14: #{tpu_custom_call.1} parent=11 // pred_check_branch
          %171 = sbr.rel (%p169) target = $region16
        $region15: #{tpu_custom_call.1} parent=11 // pred_region
          %s173 = ssub.s32 384, 384
          %174 = vsyncadd [#allocation6], %s173
          %s175 = sshll.u32 [#allocation5], 4
          %s176 = int_to_ptr.vmem [resolvable:$true] %s175
          %181 = dma.hbm_to_vmem [thread:$0]  %s1, 384, %s176, [#allocation6], 128, 128, 8
        $region16: #{tpu_custom_call.1} parent=11 // pred_fallthru
          _
        // Predicated region
        $region17: #{tpu_custom_call.1} parent=11 // pred_check
          %p182 = pneg %p86
        $region18: #{tpu_custom_call.1} parent=11 // pred_check_branch
          %184 = sbr.rel (%p182) target = $region20
        $region19: #{tpu_custom_call.1} parent=11 // pred_region
          _
        $region20: #{tpu_custom_call.1} parent=11 // pred_fallthru
          _
        // Predicated region
        $region21: #{tpu_custom_call.1} parent=11 // pred_check
          %p185 = pneg %p107
        $region22: #{tpu_custom_call.1} parent=11 // pred_check_branch
          %187 = sbr.rel (%p185) target = $region24
        $region23: #{tpu_custom_call.1} parent=11 // pred_region
          _
        $region24: #{tpu_custom_call.1} parent=11 // pred_fallthru
          _
        // Predicated region
        $region25: #{tpu_custom_call.1} parent=11 // pred_check
          %p188 = pneg %p128
        $region26: #{tpu_custom_call.1} parent=11 // pred_check_branch
          %190 = sbr.rel (%p188) target = $region28
        $region27: #{tpu_custom_call.1} parent=11 // pred_region
          _
        $region28: #{tpu_custom_call.1} parent=11 // pred_fallthru
          _
      $region12: #{tpu_custom_call.1} parent=5 // pred_fallthru
        _
      %p191 = scmp.lt.s32.totalorder %s18, 2
      // Predicated region
      $region29: #{tpu_custom_call.1} parent=5 // pred_check
        %p192 = pneg %p191
      $region30: #{tpu_custom_call.1} parent=5 // pred_check_branch
        %194 = sbr.rel (%p192) target = $region32
      $region31: #{tpu_custom_call.1} parent=5 // pred_region
        // Predicated region
        $region33: #{tpu_custom_call.1} parent=31 // pred_check
          %p195 = pneg %p38
        $region34: #{tpu_custom_call.1} parent=31 // pred_check_branch
          %197 = sbr.rel (%p195) target = $region36
        $region35: #{tpu_custom_call.1} parent=31 // pred_region
          %s198 = sand.u32 %s28, 1
          %s199 = scalar_lea.sflag [#allocation3], %s198
          %s200 = sand.u32 %s28, 1
          %s201 = smul.addr %s200, 8
          %s202 = scalar_lea.vmem [#allocation2], %s201
          %s204 = ssub.s32 128, 128
          %205 = vsyncadd %s199, %s204
          %s206 = smul.addr %s18, 128
          %s207 = scalar_lea.hbm %s0, %s206
          %s209 = sshll.u32 %s202, 4
          %s210 = int_to_ptr.vmem [resolvable:$true] %s209
          %212 = dma.hbm_to_vmem [thread:$0]  %s207, 128, %s210, %s199
        $region36: #{tpu_custom_call.1} parent=31 // pred_fallthru
          _
      $region32: #{tpu_custom_call.1} parent=5 // pred_fallthru
        _
      %p213 = scmp.le.s32.totalorder 1, %s18
      %p214 = scmp.lt.s32.totalorder %s18, 3
      %p215 = pnand %p213, %p214
      %p216 = pneg %p215
      // Predicated region
      $region37: #{tpu_custom_call.1} parent=5 // pred_check
        _
      $region38: #{tpu_custom_call.1} parent=5 // pred_check_branch
        %218 = sbr.rel (%p215) target = $region40
      $region39: #{tpu_custom_call.1} parent=5 // pred_region
        %s219 = ssub.s32 %s18, 1
        %s220 = sand.u32 %s31, 1
        %s221 = scalar_lea.sflag [#allocation3], %s220
        %s222 = sand.u32 %s31, 1
        %s223 = smul.addr %s222, 8
        %s224 = scalar_lea.vmem [#allocation2], %s223
        // Predicated region
        $region41: #{tpu_custom_call.1} parent=39 // pred_check
          %p225 = pneg %p44
        $region42: #{tpu_custom_call.1} parent=39 // pred_check_branch
          %227 = sbr.rel (%p225) target = $region44
        $region43: #{tpu_custom_call.1} parent=39 // pred_region
          %228 = dma.done %s221, 128
        $region44: #{tpu_custom_call.1} parent=39 // pred_fallthru
          _
        // Predicated region
        $region45: #{tpu_custom_call.1} parent=39 // pred_check
          %p229 = pneg %p65
        $region46: #{tpu_custom_call.1} parent=39 // pred_check_branch
          %231 = sbr.rel (%p229) target = $region48
        $region47: #{tpu_custom_call.1} parent=39 // pred_region
          %232 = dma.done [#allocation6], 384
        $region48: #{tpu_custom_call.1} parent=39 // pred_fallthru
          _
        %s233 = sand.u32 %s31, 1
        %s234 = scalar_lea.sflag [#allocation3], %s233
        %s235 = sand.u32 %s31, 1
        %s236 = smul.addr %s235, 8
        %s237 = scalar_lea.vmem [#allocation2], %s236
        %p238 = pneg %p44
        %p239 = pneg %p41
        %p240 = pneg %p65
        %p241 = pneg %p62
        %p242 = pneg %p86
        %p243 = pneg %p83
        %p244 = pneg %p107
        %p245 = pneg %p104
        %p246 = pneg %p128
        %p247 = pneg %p125
        %p248 = pneg %p154
        %p249 = pneg %p151
        %s250 = sand.u32 %s141, 1
        %s251 = scalar_lea.sflag [#allocation4], %s250
        %s252 = sand.u32 %s141, 1
        %s253 = smul.addr %s252, 8
        %s254 = scalar_lea.vmem [#allocation7], %s253
        %v255 = vlaneseq
        %v256 = vand.u32 %v255, 127
        %v257 = vld [vmem:[%s224] sm:$0xff]
        %vm258 = vcmp.eq.s32.totalorder %v256, 0
        %259 = vrot.lane.b32.xlu0 %v257, 1
        %v260 = vpop.permute.xlu0 %259
        %v261 = vsel %vm258, 0.0, %v260
        %vm262 = vcmp.eq.s32.totalorder %v256, 127
        %263 = vrot.lane.b32.xlu0 %v257, 127
        %v264 = vpop.permute.xlu0 %263
        %v265 = vsel %vm262, 0.0, %v264
        %v266 = vld [vmem:[#allocation5] sm:$0xff]
        %s267 = scalar_lea.vmem [#allocation5], 8
        %v268 = vld [vmem:[%s267] sm:$0xff]
        %vm269 = vcmask 64512
        %v271 = vsel %vm269, %v268, 0
        %273 = vmatprep.subr.mxu0 0.0
        %274 = vmatpush1.msra.mxu0 %v257
        %275 = vmatprep.subr.mxu0 0.0
        %276 = vmatpush1.msra.mxu0 0.0
        %277 = vmatprep.subr.mxu0 0.0
        %278 = vmatpush1.msra.mxu0 0.0
        %279 = vmatprep.subr.mxu0 0.0
        %280 = vmatpush1.msra.mxu0 0.0
        %281 = vmatprep.subr.mxu0 0.0
        %282 = vmatpush1.msra.mxu0 0.0
        %283 = vmatprep.subr.mxu0 0.0
        %284 = vmatpush1.msra.mxu0 0.0
        %285 = vmatprep.subr.mxu0 0.0
        %286 = vmatpush1.msra.mxu0 0.0
        %287 = vmatprep.subr.mxu0 0.0
        %288 = vmatpush1.msra.mxu0 0.0
        %289 = vmatprep.subr.mxu0 0.0
        %290 = vmatpush1.msra.mxu0 0.0
        %291 = vmatprep.subr.mxu0 0.0
        %292 = vmatpush1.msra.mxu0 0.0
        %293 = vmatprep.subr.mxu0 0.0
        %294 = vmatpush1.msra.mxu0 0.0
        %295 = vmatprep.subr.mxu0 0.0
        %296 = vmatpush1.msra.mxu0 0.0
        %297 = vmatprep.subr.mxu0 0.0
        %298 = vmatpush1.msra.mxu0 0.0
        %299 = vmatprep.subr.mxu0 0.0
        %300 = vmatpush1.msra.mxu0 0.0
        %301 = vmatprep.subr.mxu0 0.0
        %302 = vmatpush1.msra.mxu0 0.0
        %303 = vmatprep.subr.mxu0 0.0
        %304 = vmatpush1.msra.mxu0 0.0
        %305 = vmatprep.subr.mxu0 0.0
        %306 = vmatpush1.msra.mxu0 0.0
        %307 = vmatprep.subr.mxu0 0.0
        %308 = vmatpush1.msra.mxu0 0.0
        %309 = vmatprep.subr.mxu0 0.0
        %310 = vmatpush1.msra.mxu0 0.0
        %311 = vmatprep.subr.mxu0 0.0
        %312 = vmatpush1.msra.mxu0 0.0
        %313 = vmatprep.subr.mxu0 0.0
        %314 = vmatpush1.msra.mxu0 0.0
        %315 = vmatprep.subr.mxu0 0.0
        %316 = vmatpush1.msra.mxu0 0.0
        %317 = vmatprep.subr.mxu0 0.0
        %318 = vmatpush1.msra.mxu0 0.0
        %319 = vmatprep.subr.mxu0 0.0
        %320 = vmatpush1.msra.mxu0 0.0
        %321 = vmatprep.subr.mxu0 0.0
        %322 = vmatpush1.msra.mxu0 0.0
        %323 = vmatprep.subr.mxu0 0.0
        %324 = vmatpush1.msra.mxu0 0.0
        %325 = vmatprep.subr.mxu0 0.0
        %326 = vmatpush1.msra.mxu0 0.0
        %327 = vmatprep.subr.mxu0 0.0
        %328 = vmatpush1.msra.mxu0 0.0
        %329 = vmatprep.subr.mxu0 0.0
        %330 = vmatpush1.msra.mxu0 0.0
        %331 = vmatprep.subr.mxu0 0.0
        %332 = vmatpush1.msra.mxu0 0.0
        %333 = vmatprep.subr.mxu0 0.0
        %334 = vmatpush1.msra.mxu0 0.0
        %335 = vmatprep.subr.mxu0 0.0
        %336 = vmatpush1.msra.mxu0 0.0
        %337 = vmatprep.mubr.f32.mxu0 0.0
        %338 = vmatmul.mubr.f32.gmra.mrb[0].mxu0 %v271
        %v339 = vpop.f32.mrb[0].mxu0
        %v340 = vadd.f32 0.0, %v339
        %v341 = vpop.f32.mrb[0].mxu0
        %342 = vdwg.mxu0
        %v344 = vsel %vm269, %v266, 0
        %346 = vmatprep.subr.mxu0 0.0
        %347 = vmatpush1.msra.mxu0 %v261
        %348 = vmatprep.subr.mxu0 0.0
        %349 = vmatpush1.msra.mxu0 0.0
        %350 = vmatprep.subr.mxu0 0.0
        %351 = vmatpush1.msra.mxu0 0.0
        %352 = vmatprep.subr.mxu0 0.0
        %353 = vmatpush1.msra.mxu0 0.0
        %354 = vmatprep.subr.mxu0 0.0
        %355 = vmatpush1.msra.mxu0 0.0
        %356 = vmatprep.subr.mxu0 0.0
        %357 = vmatpush1.msra.mxu0 0.0
        %358 = vmatprep.subr.mxu0 0.0
        %359 = vmatpush1.msra.mxu0 0.0
        %360 = vmatprep.subr.mxu0 0.0
        %361 = vmatpush1.msra.mxu0 0.0
        %362 = vmatprep.subr.mxu0 0.0
        %363 = vmatpush1.msra.mxu0 0.0
        %364 = vmatprep.subr.mxu0 0.0
        %365 = vmatpush1.msra.mxu0 0.0
        %366 = vmatprep.subr.mxu0 0.0
        %367 = vmatpush1.msra.mxu0 0.0
        %368 = vmatprep.subr.mxu0 0.0
        %369 = vmatpush1.msra.mxu0 0.0
        %370 = vmatprep.subr.mxu0 0.0
        %371 = vmatpush1.msra.mxu0 0.0
        %372 = vmatprep.subr.mxu0 0.0
        %373 = vmatpush1.msra.mxu0 0.0
        %374 = vmatprep.subr.mxu0 0.0
        %375 = vmatpush1.msra.mxu0 0.0
        %376 = vmatprep.subr.mxu0 0.0
        %377 = vmatpush1.msra.mxu0 0.0
        %378 = vmatprep.subr.mxu0 0.0
        %379 = vmatpush1.msra.mxu0 0.0
        %380 = vmatprep.subr.mxu0 0.0
        %381 = vmatpush1.msra.mxu0 0.0
        %382 = vmatprep.subr.mxu0 0.0
        %383 = vmatpush1.msra.mxu0 0.0
        %384 = vmatprep.subr.mxu0 0.0
        %385 = vmatpush1.msra.mxu0 0.0
        %386 = vmatprep.subr.mxu0 0.0
        %387 = vmatpush1.msra.mxu0 0.0
        %388 = vmatprep.subr.mxu0 0.0
        %389 = vmatpush1.msra.mxu0 0.0
        %390 = vmatprep.subr.mxu0 0.0
        %391 = vmatpush1.msra.mxu0 0.0
        %392 = vmatprep.subr.mxu0 0.0
        %393 = vmatpush1.msra.mxu0 0.0
        %394 = vmatprep.subr.mxu0 0.0
        %395 = vmatpush1.msra.mxu0 0.0
        %396 = vmatprep.subr.mxu0 0.0
        %397 = vmatpush1.msra.mxu0 0.0
        %398 = vmatprep.subr.mxu0 0.0
        %399 = vmatpush1.msra.mxu0 0.0
        %400 = vmatprep.subr.mxu0 0.0
        %401 = vmatpush1.msra.mxu0 0.0
        %402 = vmatprep.subr.mxu0 0.0
        %403 = vmatpush1.msra.mxu0 0.0
        %404 = vmatprep.subr.mxu0 0.0
        %405 = vmatpush1.msra.mxu0 0.0
        %406 = vmatprep.subr.mxu0 0.0
        %407 = vmatpush1.msra.mxu0 0.0
        %408 = vmatprep.subr.mxu0 0.0
        %409 = vmatpush1.msra.mxu0 0.0
        %410 = vmatprep.mubr.f32.mxu0 0.0
        %411 = vmatmul.mubr.f32.gmra.mrb[0].mxu0 %v344
        %v412 = vpop.f32.mrb[0].mxu0
        %v413 = vadd.f32 %v340, %v412
        %v414 = vpop.f32.mrb[0].mxu0
        %415 = vdwg.mxu0
        %s416 = scalar_lea.vmem [#allocation5], 16
        %v417 = vld [vmem:[%s416] sm:$0xff]
        %v419 = vsel %vm269, %v417, 0
        %421 = vmatprep.subr.mxu0 0.0
        %422 = vmatpush1.msra.mxu0 %v265
        %423 = vmatprep.subr.mxu0 0.0
        %424 = vmatpush1.msra.mxu0 0.0
        %425 = vmatprep.subr.mxu0 0.0
        %426 = vmatpush1.msra.mxu0 0.0
        %427 = vmatprep.subr.mxu0 0.0
        %428 = vmatpush1.msra.mxu0 0.0
        %429 = vmatprep.subr.mxu0 0.0
        %430 = vmatpush1.msra.mxu0 0.0
        %431 = vmatprep.subr.mxu0 0.0
        %432 = vmatpush1.msra.mxu0 0.0
        %433 = vmatprep.subr.mxu0 0.0
        %434 = vmatpush1.msra.mxu0 0.0
        %435 = vmatprep.subr.mxu0 0.0
        %436 = vmatpush1.msra.mxu0 0.0
        %437 = vmatprep.subr.mxu0 0.0
        %438 = vmatpush1.msra.mxu0 0.0
        %439 = vmatprep.subr.mxu0 0.0
        %440 = vmatpush1.msra.mxu0 0.0
        %441 = vmatprep.subr.mxu0 0.0
        %442 = vmatpush1.msra.mxu0 0.0
        %443 = vmatprep.subr.mxu0 0.0
        %444 = vmatpush1.msra.mxu0 0.0
        %445 = vmatprep.subr.mxu0 0.0
        %446 = vmatpush1.msra.mxu0 0.0
        %447 = vmatprep.subr.mxu0 0.0
        %448 = vmatpush1.msra.mxu0 0.0
        %449 = vmatprep.subr.mxu0 0.0
        %450 = vmatpush1.msra.mxu0 0.0
        %451 = vmatprep.subr.mxu0 0.0
        %452 = vmatpush1.msra.mxu0 0.0
        %453 = vmatprep.subr.mxu0 0.0
        %454 = vmatpush1.msra.mxu0 0.0
        %455 = vmatprep.subr.mxu0 0.0
        %456 = vmatpush1.msra.mxu0 0.0
        %457 = vmatprep.subr.mxu0 0.0
        %458 = vmatpush1.msra.mxu0 0.0
        %459 = vmatprep.subr.mxu0 0.0
        %460 = vmatpush1.msra.mxu0 0.0
        %461 = vmatprep.subr.mxu0 0.0
        %462 = vmatpush1.msra.mxu0 0.0
        %463 = vmatprep.subr.mxu0 0.0
        %464 = vmatpush1.msra.mxu0 0.0
        %465 = vmatprep.subr.mxu0 0.0
        %466 = vmatpush1.msra.mxu0 0.0
        %467 = vmatprep.subr.mxu0 0.0
        %468 = vmatpush1.msra.mxu0 0.0
        %469 = vmatprep.subr.mxu0 0.0
        %470 = vmatpush1.msra.mxu0 0.0
        %471 = vmatprep.subr.mxu0 0.0
        %472 = vmatpush1.msra.mxu0 0.0
        %473 = vmatprep.subr.mxu0 0.0
        %474 = vmatpush1.msra.mxu0 0.0
        %475 = vmatprep.subr.mxu0 0.0
        %476 = vmatpush1.msra.mxu0 0.0
        %477 = vmatprep.subr.mxu0 0.0
        %478 = vmatpush1.msra.mxu0 0.0
        %479 = vmatprep.subr.mxu0 0.0
        %480 = vmatpush1.msra.mxu0 0.0
        %481 = vmatprep.subr.mxu0 0.0
        %482 = vmatpush1.msra.mxu0 0.0
        %483 = vmatprep.subr.mxu0 0.0
        %484 = vmatpush1.msra.mxu0 0.0
        %485 = vmatprep.mubr.f32.mxu0 0.0
        %486 = vmatmul.mubr.f32.gmra.mrb[0].mxu0 %v419
        %v487 = vpop.f32.mrb[0].mxu0
        %v488 = vadd.f32 0.0, %v487
        %v489 = vpop.f32.mrb[0].mxu0
        %490 = vdwg.mxu0
        %v491 = vadd.f32 %v413, %v488
        %v492 = vld [vmem:[%s2] sm:$0xff]
        %494 = vset.pattern.permute.xlu0 0
        %495 = vperm.xlu0 %494, %v492
        %v496 = vpop.permute.xlu0 %495
        %v498 = vadd.f32 %v491, %v496
        %v499 = vmax.f32 %v498, 0.0
        %500 = vrot.lane.b32.xlu0 %v499, 1
        %v501 = vpop.permute.xlu0 %500
        %v502 = vsel %vm258, 0.0, %v501
        %503 = vrot.lane.b32.xlu0 %v499, 127
        %v504 = vpop.permute.xlu0 %503
        %v505 = vsel %vm262, 0.0, %v504
        %v506 = vld [vmem:[%s3] sm:$0xff]
        %s507 = scalar_lea.vmem %s3, 8
        %v508 = vld [vmem:[%s507] sm:$0xff]
        %v510 = vsel %vm269, %v508, 0
        %512 = vmatprep.subr.mxu0 0.0
        %513 = vmatpush1.msra.mxu0 %v499
        %514 = vmatprep.subr.mxu0 0.0
        %515 = vmatpush1.msra.mxu0 0.0
        %516 = vmatprep.subr.mxu0 0.0
        %517 = vmatpush1.msra.mxu0 0.0
        %518 = vmatprep.subr.mxu0 0.0
        %519 = vmatpush1.msra.mxu0 0.0
        %520 = vmatprep.subr.mxu0 0.0
        %521 = vmatpush1.msra.mxu0 0.0
        %522 = vmatprep.subr.mxu0 0.0
        %523 = vmatpush1.msra.mxu0 0.0
        %524 = vmatprep.subr.mxu0 0.0
        %525 = vmatpush1.msra.mxu0 0.0
        %526 = vmatprep.subr.mxu0 0.0
        %527 = vmatpush1.msra.mxu0 0.0
        %528 = vmatprep.subr.mxu0 0.0
        %529 = vmatpush1.msra.mxu0 0.0
        %530 = vmatprep.subr.mxu0 0.0
        %531 = vmatpush1.msra.mxu0 0.0
        %532 = vmatprep.subr.mxu0 0.0
        %533 = vmatpush1.msra.mxu0 0.0
        %534 = vmatprep.subr.mxu0 0.0
        %535 = vmatpush1.msra.mxu0 0.0
        %536 = vmatprep.subr.mxu0 0.0
        %537 = vmatpush1.msra.mxu0 0.0
        %538 = vmatprep.subr.mxu0 0.0
        %539 = vmatpush1.msra.mxu0 0.0
        %540 = vmatprep.subr.mxu0 0.0
        %541 = vmatpush1.msra.mxu0 0.0
        %542 = vmatprep.subr.mxu0 0.0
        %543 = vmatpush1.msra.mxu0 0.0
        %544 = vmatprep.subr.mxu0 0.0
        %545 = vmatpush1.msra.mxu0 0.0
        %546 = vmatprep.subr.mxu0 0.0
        %547 = vmatpush1.msra.mxu0 0.0
        %548 = vmatprep.subr.mxu0 0.0
        %549 = vmatpush1.msra.mxu0 0.0
        %550 = vmatprep.subr.mxu0 0.0
        %551 = vmatpush1.msra.mxu0 0.0
        %552 = vmatprep.subr.mxu0 0.0
        %553 = vmatpush1.msra.mxu0 0.0
        %554 = vmatprep.subr.mxu0 0.0
        %555 = vmatpush1.msra.mxu0 0.0
        %556 = vmatprep.subr.mxu0 0.0
        %557 = vmatpush1.msra.mxu0 0.0
        %558 = vmatprep.subr.mxu0 0.0
        %559 = vmatpush1.msra.mxu0 0.0
        %560 = vmatprep.subr.mxu0 0.0
        %561 = vmatpush1.msra.mxu0 0.0
        %562 = vmatprep.subr.mxu0 0.0
        %563 = vmatpush1.msra.mxu0 0.0
        %564 = vmatprep.subr.mxu0 0.0
        %565 = vmatpush1.msra.mxu0 0.0
        %566 = vmatprep.subr.mxu0 0.0
        %567 = vmatpush1.msra.mxu0 0.0
        %568 = vmatprep.subr.mxu0 0.0
        %569 = vmatpush1.msra.mxu0 0.0
        %570 = vmatprep.subr.mxu0 0.0
        %571 = vmatpush1.msra.mxu0 0.0
        %572 = vmatprep.subr.mxu0 0.0
        %573 = vmatpush1.msra.mxu0 0.0
        %574 = vmatprep.subr.mxu0 0.0
        %575 = vmatpush1.msra.mxu0 0.0
        %576 = vmatprep.mubr.f32.mxu0 0.0
        %577 = vmatmul.mubr.f32.gmra.mrb[0].mxu0 %v510
        %v578 = vpop.f32.mrb[0].mxu0
        %v579 = vadd.f32 0.0, %v578
        %v580 = vpop.f32.mrb[0].mxu0
        %581 = vdwg.mxu0
        %v583 = vsel %vm269, %v506, 0
        %585 = vmatprep.subr.mxu0 0.0
        %586 = vmatpush1.msra.mxu0 %v502
        %587 = vmatprep.subr.mxu0 0.0
        %588 = vmatpush1.msra.mxu0 0.0
        %589 = vmatprep.subr.mxu0 0.0
        %590 = vmatpush1.msra.mxu0 0.0
        %591 = vmatprep.subr.mxu0 0.0
        %592 = vmatpush1.msra.mxu0 0.0
        %593 = vmatprep.subr.mxu0 0.0
        %594 = vmatpush1.msra.mxu0 0.0
        %595 = vmatprep.subr.mxu0 0.0
        %596 = vmatpush1.msra.mxu0 0.0
        %597 = vmatprep.subr.mxu0 0.0
        %598 = vmatpush1.msra.mxu0 0.0
        %599 = vmatprep.subr.mxu0 0.0
        %600 = vmatpush1.msra.mxu0 0.0
        %601 = vmatprep.subr.mxu0 0.0
        %602 = vmatpush1.msra.mxu0 0.0
        %603 = vmatprep.subr.mxu0 0.0
        %604 = vmatpush1.msra.mxu0 0.0
        %605 = vmatprep.subr.mxu0 0.0
        %606 = vmatpush1.msra.mxu0 0.0
        %607 = vmatprep.subr.mxu0 0.0
        %608 = vmatpush1.msra.mxu0 0.0
        %609 = vmatprep.subr.mxu0 0.0
        %610 = vmatpush1.msra.mxu0 0.0
        %611 = vmatprep.subr.mxu0 0.0
        %612 = vmatpush1.msra.mxu0 0.0
        %613 = vmatprep.subr.mxu0 0.0
        %614 = vmatpush1.msra.mxu0 0.0
        %615 = vmatprep.subr.mxu0 0.0
        %616 = vmatpush1.msra.mxu0 0.0
        %617 = vmatprep.subr.mxu0 0.0
        %618 = vmatpush1.msra.mxu0 0.0
        %619 = vmatprep.subr.mxu0 0.0
        %620 = vmatpush1.msra.mxu0 0.0
        %621 = vmatprep.subr.mxu0 0.0
        %622 = vmatpush1.msra.mxu0 0.0
        %623 = vmatprep.subr.mxu0 0.0
        %624 = vmatpush1.msra.mxu0 0.0
        %625 = vmatprep.subr.mxu0 0.0
        %626 = vmatpush1.msra.mxu0 0.0
        %627 = vmatprep.subr.mxu0 0.0
        %628 = vmatpush1.msra.mxu0 0.0
        %629 = vmatprep.subr.mxu0 0.0
        %630 = vmatpush1.msra.mxu0 0.0
        %631 = vmatprep.subr.mxu0 0.0
        %632 = vmatpush1.msra.mxu0 0.0
        %633 = vmatprep.subr.mxu0 0.0
        %634 = vmatpush1.msra.mxu0 0.0
        %635 = vmatprep.subr.mxu0 0.0
        %636 = vmatpush1.msra.mxu0 0.0
        %637 = vmatprep.subr.mxu0 0.0
        %638 = vmatpush1.msra.mxu0 0.0
        %639 = vmatprep.subr.mxu0 0.0
        %640 = vmatpush1.msra.mxu0 0.0
        %641 = vmatprep.subr.mxu0 0.0
        %642 = vmatpush1.msra.mxu0 0.0
        %643 = vmatprep.subr.mxu0 0.0
        %644 = vmatpush1.msra.mxu0 0.0
        %645 = vmatprep.subr.mxu0 0.0
        %646 = vmatpush1.msra.mxu0 0.0
        %647 = vmatprep.subr.mxu0 0.0
        %648 = vmatpush1.msra.mxu0 0.0
        %649 = vmatprep.mubr.f32.mxu0 0.0
        %650 = vmatmul.mubr.f32.gmra.mrb[0].mxu0 %v583
        %v651 = vpop.f32.mrb[0].mxu0
        %v652 = vadd.f32 %v579, %v651
        %v653 = vpop.f32.mrb[0].mxu0
        %654 = vdwg.mxu0
        %s655 = scalar_lea.vmem %s3, 16
        %v656 = vld [vmem:[%s655] sm:$0xff]
        %v658 = vsel %vm269, %v656, 0
        %660 = vmatprep.subr.mxu0 0.0
        %661 = vmatpush1.msra.mxu0 %v505
        %662 = vmatprep.subr.mxu0 0.0
        %663 = vmatpush1.msra.mxu0 0.0
        %664 = vmatprep.subr.mxu0 0.0
        %665 = vmatpush1.msra.mxu0 0.0
        %666 = vmatprep.subr.mxu0 0.0
        %667 = vmatpush1.msra.mxu0 0.0
        %668 = vmatprep.subr.mxu0 0.0
        %669 = vmatpush1.msra.mxu0 0.0
        %670 = vmatprep.subr.mxu0 0.0
        %671 = vmatpush1.msra.mxu0 0.0
        %672 = vmatprep.subr.mxu0 0.0
        %673 = vmatpush1.msra.mxu0 0.0
        %674 = vmatprep.subr.mxu0 0.0
        %675 = vmatpush1.msra.mxu0 0.0
        %676 = vmatprep.subr.mxu0 0.0
        %677 = vmatpush1.msra.mxu0 0.0
        %678 = vmatprep.subr.mxu0 0.0
        %679 = vmatpush1.msra.mxu0 0.0
        %680 = vmatprep.subr.mxu0 0.0
        %681 = vmatpush1.msra.mxu0 0.0
        %682 = vmatprep.subr.mxu0 0.0
        %683 = vmatpush1.msra.mxu0 0.0
        %684 = vmatprep.subr.mxu0 0.0
        %685 = vmatpush1.msra.mxu0 0.0
        %686 = vmatprep.subr.mxu0 0.0
        %687 = vmatpush1.msra.mxu0 0.0
        %688 = vmatprep.subr.mxu0 0.0
        %689 = vmatpush1.msra.mxu0 0.0
        %690 = vmatprep.subr.mxu0 0.0
        %691 = vmatpush1.msra.mxu0 0.0
        %692 = vmatprep.subr.mxu0 0.0
        %693 = vmatpush1.msra.mxu0 0.0
        %694 = vmatprep.subr.mxu0 0.0
        %695 = vmatpush1.msra.mxu0 0.0
        %696 = vmatprep.subr.mxu0 0.0
        %697 = vmatpush1.msra.mxu0 0.0
        %698 = vmatprep.subr.mxu0 0.0
        %699 = vmatpush1.msra.mxu0 0.0
        %700 = vmatprep.subr.mxu0 0.0
        %701 = vmatpush1.msra.mxu0 0.0
        %702 = vmatprep.subr.mxu0 0.0
        %703 = vmatpush1.msra.mxu0 0.0
        %704 = vmatprep.subr.mxu0 0.0
        %705 = vmatpush1.msra.mxu0 0.0
        %706 = vmatprep.subr.mxu0 0.0
        %707 = vmatpush1.msra.mxu0 0.0
        %708 = vmatprep.subr.mxu0 0.0
        %709 = vmatpush1.msra.mxu0 0.0
        %710 = vmatprep.subr.mxu0 0.0
        %711 = vmatpush1.msra.mxu0 0.0
        %712 = vmatprep.subr.mxu0 0.0
        %713 = vmatpush1.msra.mxu0 0.0
        %714 = vmatprep.subr.mxu0 0.0
        %715 = vmatpush1.msra.mxu0 0.0
        %716 = vmatprep.subr.mxu0 0.0
        %717 = vmatpush1.msra.mxu0 0.0
        %718 = vmatprep.subr.mxu0 0.0
        %719 = vmatpush1.msra.mxu0 0.0
        %720 = vmatprep.subr.mxu0 0.0
        %721 = vmatpush1.msra.mxu0 0.0
        %722 = vmatprep.subr.mxu0 0.0
        %723 = vmatpush1.msra.mxu0 0.0
        %724 = vmatprep.mubr.f32.mxu0 0.0
        %725 = vmatmul.mubr.f32.gmra.mrb[0].mxu0 %v658
        %v726 = vpop.f32.mrb[0].mxu0
        %v727 = vadd.f32 0.0, %v726
        %v728 = vpop.f32.mrb[0].mxu0
        %729 = vdwg.mxu0
        %v730 = vadd.f32 %v652, %v727
        %v731 = vld [vmem:[%s4] sm:$0xff]
        %733 = vset.pattern.permute.xlu0 0
        %734 = vperm.xlu0 %733, %v731
        %v735 = vpop.permute.xlu0 %734
        %v737 = vadd.f32 %v730, %v735
        %v738 = vmax.f32 %v737, 0.0
        %v739 = vadd.f32 %v738, %v257
        %740 = vst [vmem:[%s254] sm:$0xff] %v739
        %s741 = sand.u32 %s141, 1
        %s742 = scalar_lea.sflag [#allocation4], %s741
        %s743 = sand.u32 %s141, 1
        %s744 = smul.addr %s743, 8
        %s745 = scalar_lea.vmem [#allocation7], %s744
        // Predicated region
        $region49: #{tpu_custom_call.1} parent=39 // pred_check
          %p746 = pneg %p151
        $region50: #{tpu_custom_call.1} parent=39 // pred_check_branch
          %748 = sbr.rel (%p746) target = $region52
        $region51: #{tpu_custom_call.1} parent=39 // pred_region
          %s750 = ssub.s32 128, 128
          %751 = vsyncadd %s742, %s750
          %s752 = smul.addr %s23, 128
          %s753 = scalar_lea.hbm %s5, %s752
          %s755 = sshll.u32 %s745, 4
          %s756 = int_to_ptr.vmem [resolvable:$true] %s755
          %758 = dma.vmem_to_hbm [thread:$0]  %s756, 128, %s753, %s742
        $region52: #{tpu_custom_call.1} parent=39 // pred_fallthru
          _
      $region40: #{tpu_custom_call.1} parent=5 // pred_fallthru
        _
      %p759 = scmp.le.s32.totalorder 2, %s18
      // Predicated region
      $region53: #{tpu_custom_call.1} parent=5 // pred_check
        %p760 = pneg %p759
      $region54: #{tpu_custom_call.1} parent=5 // pred_check_branch
        %762 = sbr.rel (%p760) target = $region56
      $region55: #{tpu_custom_call.1} parent=5 // pred_region
        %s763 = ssub.s32 %s18, 2
        // Predicated region
        $region57: #{tpu_custom_call.1} parent=55 // pred_check
          %p764 = pneg %p157
        $region58: #{tpu_custom_call.1} parent=55 // pred_check_branch
          %766 = sbr.rel (%p764) target = $region60
        $region59: #{tpu_custom_call.1} parent=55 // pred_region
          %s767 = sand.u32 %s142, 1
          %s768 = scalar_lea.sflag [#allocation4], %s767
          %s769 = sand.u32 %s142, 1
          %s770 = smul.addr %s769, 8
          %s771 = scalar_lea.vmem [#allocation7], %s770
          %772 = dma.done %s768, 128
        $region60: #{tpu_custom_call.1} parent=55 // pred_fallthru
          _
      $region56: #{tpu_custom_call.1} parent=5 // pred_fallthru
        _
    $region6: #{tpu_custom_call.1} parent=1 // loop_footer
      %s22 = sadd.s32 1, %s18
    $region7: #{tpu_custom_call.1} parent=1 // loop_footer_branch
      %17 = sbr.rel target = $region3
    $region8: #{tpu_custom_call.1} parent=1 // loop_exit
      _
    %773 = vsyncpa [#allocation3], 1
    %s774 = scalar_lea.sflag [#allocation3], 1
    %775 = vsyncpa %s774, 1
    %776 = vsyncpa [#allocation6], 1
    %777 = vsyncpa [#allocation4], 1
    %s778 = scalar_lea.sflag [#allocation4], 1
    %779 = vsyncpa %s778, 1

// kernel: tpu_custom_call.1
$region0: #{tpu_custom_call.1}
  #allocation0 [shape = 'u32[]', space=smem, size = 0x4, offset = 0x4, fixed_abs, tag = 'smem constant byte address 0x4 - core index']
  #allocation1 [shape = 'u32[144,128]{1,0:T(1,128)}', space=vmem, size = 0x12000, scoped, tag = 'internal scratch']
  %s0 = inlined_call_operand.hbm [shape: f32[2,8,128], index: 0, kind: input, shape index: {}]
  %s1 = inlined_call_operand.hbm [shape: f32[3,8,8], index: 1, kind: input, shape index: {}]
  %s2 = inlined_call_operand.vmem [shape: f32[8,1], index: 2, kind: input, shape index: {}]
  %s3 = inlined_call_operand.vmem [shape: f32[3,8,8], index: 3, kind: input, shape index: {}]
  %s4 = inlined_call_operand.vmem [shape: f32[8,1], index: 4, kind: input, shape index: {}]
  %s5 = inlined_call_operand.hbm [shape: f32[2,8,128], index: 5, kind: output, shape index: {}]
  %s6 = sld [smem:[#allocation0]]
  $region61: #{tpu_custom_call.1} parent=0
    _
  %s8 = ssub.s32 1, %s6
  %s9 = scalar_select 0, %s8, %s6
  $region1: #{tpu_custom_call.1} parent=0
    #allocation2 [shape = 'u8[8192]{0}', space=vmem, size = 0x2000, scoped, tag = 'input window, operand 0']
    #allocation3 [shape = 's32[2]{0}', space=sflag, size = 0x8, scoped, tag = 'scoped memory for tpu_custom_call.1']
    #allocation4 [shape = 's32[2]{0}', space=sflag, size = 0x8, scoped, tag = 'scoped memory for tpu_custom_call.1']
    #allocation5 [shape = 'u8[12288]{0}', space=vmem, size = 0x3000, scoped, tag = 'input window, operand 1, single buffered']
    #allocation6 [shape = 's32[1]{0}', space=sflag, size = 0x4, scoped, tag = 'scoped memory for tpu_custom_call.1']
    #allocation7 [shape = 'u8[8192]{0}', space=vmem, size = 0x2000, scoped, tag = 'output window, operand 0']
    %10 = vsyncpa [#allocation3], 0
    %s11 = scalar_lea.sflag [#allocation3], 1
    %12 = vsyncpa %s11, 0
    %13 = vsyncpa [#allocation6], 0
    %14 = vsyncpa [#allocation4], 0
    %s15 = scalar_lea.sflag [#allocation4], 1
    %16 = vsyncpa %s15, 0
    loop: start=0, step=1, limit=4
    $region2: #{tpu_custom_call.1} parent=1 // loop_pre_header
      _
    $region3: #{tpu_custom_call.1} parent=1 // loop_header
      %s18 = sphi 0, %s22
      %p19 = scmp.ge.s32.totalorder %s18, 4
      %s28 = sphi 0, %s30
      %s31 = sphi 0, %s28
      %s32 = sphi 0, %s31
      %s48 = sphi 0, %s32
      %s52 = sphi 0, %s52
      %s54 = sphi 0, %s52
      %s55 = sphi 0, %s54
      %s69 = sphi 0, %s55
      %s73 = sphi 0, %s73
      %s75 = sphi 0, %s73
      %s76 = sphi 0, %s75
      %s90 = sphi 0, %s76
      %s94 = sphi 0, %s94
      %s96 = sphi 0, %s94
      %s97 = sphi 0, %s96
      %s111 = sphi 0, %s97
      %s115 = sphi 0, %s115
      %s117 = sphi 0, %s115
      %s118 = sphi 0, %s117
      %s132 = sphi 0, %s118
      %s138 = sphi 0, %s140
      %s141 = sphi 0, %s138
      %s142 = sphi 0, %s141
      %s158 = sphi 0, %s142
    $region4: #{tpu_custom_call.1} parent=1 // loop_header_branch
      %21 = sbr.rel (%p19) target = $region8
    $region5: #{tpu_custom_call.1} parent=1 // loop_body
      %s23 = ssub.s32 %s18, 1
      %s24 = ssub.s32 %s18, 2
      %s25 = sadd.s32 %s18, 1
      %s26 = ssub.s32 %s18, %s25
      %p27 = scmp.eq.s32.totalorder %s26, 0
      %s29 = sadd.s32 %s28, 1
      %s30 = scalar_select %p27, %s28, %s29
      %p33 = pneg %p27
      %p34 = scmp.eq.s32.totalorder %s18, 1
      %p35 = por %p33, %p34
      %p36 = scmp.ne.s32.totalorder %s28, %s31
      %p37 = scmp.eq.s32.totalorder %s18, 0
      %p38 = por %p36, %p37
      %p39 = scmp.ne.s32.totalorder %s28, %s31
      %p40 = scmp.eq.s32.totalorder %s23, 1
      %p41 = por %p39, %p40
      %p42 = scmp.ne.s32.totalorder %s31, %s32
      %p43 = scmp.eq.s32.totalorder %s23, 0
      %p44 = por %p42, %p43
      %p45 = scmp.ne.s32.totalorder %s31, %s32
      %p46 = scmp.eq.s32.totalorder %s24, 1
      %p47 = por %p45, %p46
      %p49 = scmp.ne.s32.totalorder %s32, %s48
      %p50 = scmp.eq.s32.totalorder %s24, 0
      %p51 = por %p49, %p50
      %s53 = sadd.s32 %s52, 1
      %p56 = scmp.eq.s32.totalorder %s18, 1
      %p57 = scmp.ne.s32.totalorder %s52, %s54
      %p58 = scmp.eq.s32.totalorder %s18, 0
      %p59 = por %p57, %p58
      %p60 = scmp.ne.s32.totalorder %s52, %s54
      %p61 = scmp.eq.s32.totalorder %s23, 1
      %p62 = por %p60, %p61
      %p63 = scmp.ne.s32.totalorder %s54, %s55
      %p64 = scmp.eq.s32.totalorder %s23, 0
      %p65 = por %p63, %p64
      %p66 = scmp.ne.s32.totalorder %s54, %s55
      %p67 = scmp.eq.s32.totalorder %s24, 1
      %p68 = por %p66, %p67
      %p70 = scmp.ne.s32.totalorder %s55, %s69
      %p71 = scmp.eq.s32.totalorder %s24, 0
      %p72 = por %p70, %p71
      %s74 = sadd.s32 %s73, 1
      %p77 = scmp.eq.s32.totalorder %s18, 1
      %p78 = scmp.ne.s32.totalorder %s73, %s75
      %p79 = scmp.eq.s32.totalorder %s18, 0
      %p80 = por %p78, %p79
      %p81 = scmp.ne.s32.totalorder %s73, %s75
      %p82 = scmp.eq.s32.totalorder %s23, 1
      %p83 = por %p81, %p82
      %p84 = scmp.ne.s32.totalorder %s75, %s76
      %p85 = scmp.eq.s32.totalorder %s23, 0
      %p86 = por %p84, %p85
      %p87 = scmp.ne.s32.totalorder %s75, %s76
      %p88 = scmp.eq.s32.totalorder %s24, 1
      %p89 = por %p87, %p88
      %p91 = scmp.ne.s32.totalorder %s76, %s90
      %p92 = scmp.eq.s32.totalorder %s24, 0
      %p93 = por %p91, %p92
      %s95 = sadd.s32 %s94, 1
      %p98 = scmp.eq.s32.totalorder %s18, 1
      %p99 = scmp.ne.s32.totalorder %s94, %s96
      %p100 = scmp.eq.s32.totalorder %s18, 0
      %p101 = por %p99, %p100
      %p102 = scmp.ne.s32.totalorder %s94, %s96
      %p103 = scmp.eq.s32.totalorder %s23, 1
      %p104 = por %p102, %p103
      %p105 = scmp.ne.s32.totalorder %s96, %s97
      %p106 = scmp.eq.s32.totalorder %s23, 0
      %p107 = por %p105, %p106
      %p108 = scmp.ne.s32.totalorder %s96, %s97
      %p109 = scmp.eq.s32.totalorder %s24, 1
      %p110 = por %p108, %p109
      %p112 = scmp.ne.s32.totalorder %s97, %s111
      %p113 = scmp.eq.s32.totalorder %s24, 0
      %p114 = por %p112, %p113
      %s116 = sadd.s32 %s115, 1
      %p119 = scmp.eq.s32.totalorder %s18, 1
      %p120 = scmp.ne.s32.totalorder %s115, %s117
      %p121 = scmp.eq.s32.totalorder %s18, 0
      %p122 = por %p120, %p121
      %p123 = scmp.ne.s32.totalorder %s115, %s117
      %p124 = scmp.eq.s32.totalorder %s23, 1
      %p125 = por %p123, %p124
      %p126 = scmp.ne.s32.totalorder %s117, %s118
      %p127 = scmp.eq.s32.totalorder %s23, 0
      %p128 = por %p126, %p127
      %p129 = scmp.ne.s32.totalorder %s117, %s118
      %p130 = scmp.eq.s32.totalorder %s24, 1
      %p131 = por %p129, %p130
      %p133 = scmp.ne.s32.totalorder %s118, %s132
      %p134 = scmp.eq.s32.totalorder %s24, 0
      %p135 = por %p133, %p134
      %s136 = ssub.s32 %s18, %s25
      %p137 = scmp.eq.s32.totalorder %s136, 0
      %s139 = sadd.s32 %s138, 1
      %s140 = scalar_select %p137, %s138, %s139
      %p143 = pneg %p137
      %p144 = scmp.eq.s32.totalorder %s18, 1
      %p145 = por %p143, %p144
      %p146 = scmp.ne.s32.totalorder %s138, %s141
      %p147 = scmp.eq.s32.totalorder %s18, 0
      %p148 = por %p146, %p147
      %p149 = scmp.ne.s32.totalorder %s138, %s141
      %p150 = scmp.eq.s32.totalorder %s23, 1
      %p151 = por %p149, %p150
      %p152 = scmp.ne.s32.totalorder %s141, %s142
      %p153 = scmp.eq.s32.totalorder %s23, 0
      %p154 = por %p152, %p153
      %p155 = scmp.ne.s32.totalorder %s141, %s142
      %p156 = scmp.eq.s32.totalorder %s24, 1
      %p157 = por %p155, %p156
      %p159 = scmp.ne.s32.totalorder %s142, %s158
      %p160 = scmp.eq.s32.totalorder %s24, 0
      %p161 = por %p159, %p160
      %p162 = scmp.le.s32.totalorder 1, %s18
      %p163 = scmp.lt.s32.totalorder %s18, 3
      %p164 = pnand %p162, %p163
      %p165 = pneg %p164
      // Predicated region
      $region9: #{tpu_custom_call.1} parent=5 // pred_check
        _
      $region10: #{tpu_custom_call.1} parent=5 // pred_check_branch
        %167 = sbr.rel (%p164) target = $region12
      $region11: #{tpu_custom_call.1} parent=5 // pred_region
        %s168 = ssub.s32 %s18, 1
        // Predicated region
        $region13: #{tpu_custom_call.1} parent=11 // pred_check
          %p169 = pneg %p65
        $region14: #{tpu_custom_call.1} parent=11 // pred_check_branch
          %171 = sbr.rel (%p169) target = $region16
        $region15: #{tpu_custom_call.1} parent=11 // pred_region
          %s173 = ssub.s32 384, 384
          %174 = vsyncadd [#allocation6], %s173
          %s175 = sshll.u32 [#allocation5], 4
          %s176 = int_to_ptr.vmem [resolvable:$true] %s175
          %181 = dma.hbm_to_vmem [thread:$0]  %s1, 384, %s176, [#allocation6], 128, 128, 8
        $region16: #{tpu_custom_call.1} parent=11 // pred_fallthru
          _
        // Predicated region
        $region17: #{tpu_custom_call.1} parent=11 // pred_check
          %p182 = pneg %p86
        $region18: #{tpu_custom_call.1} parent=11 // pred_check_branch
          %184 = sbr.rel (%p182) target = $region20
        $region19: #{tpu_custom_call.1} parent=11 // pred_region
          _
        $region20: #{tpu_custom_call.1} parent=11 // pred_fallthru
          _
        // Predicated region
        $region21: #{tpu_custom_call.1} parent=11 // pred_check
          %p185 = pneg %p107
        $region22: #{tpu_custom_call.1} parent=11 // pred_check_branch
          %187 = sbr.rel (%p185) target = $region24
        $region23: #{tpu_custom_call.1} parent=11 // pred_region
          _
        $region24: #{tpu_custom_call.1} parent=11 // pred_fallthru
          _
        // Predicated region
        $region25: #{tpu_custom_call.1} parent=11 // pred_check
          %p188 = pneg %p128
        $region26: #{tpu_custom_call.1} parent=11 // pred_check_branch
          %190 = sbr.rel (%p188) target = $region28
        $region27: #{tpu_custom_call.1} parent=11 // pred_region
          _
        $region28: #{tpu_custom_call.1} parent=11 // pred_fallthru
          _
      $region12: #{tpu_custom_call.1} parent=5 // pred_fallthru
        _
      %p191 = scmp.lt.s32.totalorder %s18, 2
      // Predicated region
      $region29: #{tpu_custom_call.1} parent=5 // pred_check
        %p192 = pneg %p191
      $region30: #{tpu_custom_call.1} parent=5 // pred_check_branch
        %194 = sbr.rel (%p192) target = $region32
      $region31: #{tpu_custom_call.1} parent=5 // pred_region
        // Predicated region
        $region33: #{tpu_custom_call.1} parent=31 // pred_check
          %p195 = pneg %p38
        $region34: #{tpu_custom_call.1} parent=31 // pred_check_branch
          %197 = sbr.rel (%p195) target = $region36
        $region35: #{tpu_custom_call.1} parent=31 // pred_region
          %s198 = sand.u32 %s28, 1
          %s199 = scalar_lea.sflag [#allocation3], %s198
          %s200 = sand.u32 %s28, 1
          %s201 = smul.addr %s200, 8
          %s202 = scalar_lea.vmem [#allocation2], %s201
          %s204 = ssub.s32 128, 128
          %205 = vsyncadd %s199, %s204
          %s206 = smul.addr %s18, 128
          %s207 = scalar_lea.hbm %s0, %s206
          %s209 = sshll.u32 %s202, 4
          %s210 = int_to_ptr.vmem [resolvable:$true] %s209
          %212 = dma.hbm_to_vmem [thread:$0]  %s207, 128, %s210, %s199
        $region36: #{tpu_custom_call.1} parent=31 // pred_fallthru
          _
      $region32: #{tpu_custom_call.1} parent=5 // pred_fallthru
        _
      %p213 = scmp.le.s32.totalorder 1, %s18
      %p214 = scmp.lt.s32.totalorder %s18, 3
      %p215 = pnand %p213, %p214
      %p216 = pneg %p215
      // Predicated region
      $region37: #{tpu_custom_call.1} parent=5 // pred_check
        _
      $region38: #{tpu_custom_call.1} parent=5 // pred_check_branch
        %218 = sbr.rel (%p215) target = $region40
      $region39: #{tpu_custom_call.1} parent=5 // pred_region
        %s219 = ssub.s32 %s18, 1
        %s220 = sand.u32 %s31, 1
        %s221 = scalar_lea.sflag [#allocation3], %s220
        %s222 = sand.u32 %s31, 1
        %s223 = smul.addr %s222, 8
        %s224 = scalar_lea.vmem [#allocation2], %s223
        // Predicated region
        $region41: #{tpu_custom_call.1} parent=39 // pred_check
          %p225 = pneg %p44
        $region42: #{tpu_custom_call.1} parent=39 // pred_check_branch
          %227 = sbr.rel (%p225) target = $region44
        $region43: #{tpu_custom_call.1} parent=39 // pred_region
          %228 = dma.done %s221, 128
        $region44: #{tpu_custom_call.1} parent=39 // pred_fallthru
          _
        // Predicated region
        $region45: #{tpu_custom_call.1} parent=39 // pred_check
          %p229 = pneg %p65
        $region46: #{tpu_custom_call.1} parent=39 // pred_check_branch
          %231 = sbr.rel (%p229) target = $region48
        $region47: #{tpu_custom_call.1} parent=39 // pred_region
          %232 = dma.done [#allocation6], 384
        $region48: #{tpu_custom_call.1} parent=39 // pred_fallthru
          _
        %s233 = sand.u32 %s31, 1
        %s234 = scalar_lea.sflag [#allocation3], %s233
        %s235 = sand.u32 %s31, 1
        %s236 = smul.addr %s235, 8
        %s237 = scalar_lea.vmem [#allocation2], %s236
        %p238 = pneg %p44
        %p239 = pneg %p41
        %p240 = pneg %p65
        %p241 = pneg %p62
        %p242 = pneg %p86
        %p243 = pneg %p83
        %p244 = pneg %p107
        %p245 = pneg %p104
        %p246 = pneg %p128
        %p247 = pneg %p125
        %p248 = pneg %p154
        %p249 = pneg %p151
        %s250 = sand.u32 %s141, 1
        %s251 = scalar_lea.sflag [#allocation4], %s250
        %s252 = sand.u32 %s141, 1
        %s253 = smul.addr %s252, 8
        %s254 = scalar_lea.vmem [#allocation7], %s253
        %v255 = vlaneseq
        %v256 = vand.u32 %v255, 127
        %v257 = vld [vmem:[%s224] sm:$0xff]
        %vm258 = vcmp.eq.s32.totalorder %v256, 0
        %259 = vrot.lane.b32.xlu0 %v257, 1
        %v260 = vpop.permute.xlu0 %259
        %v261 = vsel %vm258, 0.0, %v260
        %vm262 = vcmp.eq.s32.totalorder %v256, 127
        %263 = vrot.lane.b32.xlu0 %v257, 127
        %v264 = vpop.permute.xlu0 %263
        %v265 = vsel %vm262, 0.0, %v264
        %v266 = vld [vmem:[#allocation5] sm:$0xff]
        %s267 = scalar_lea.vmem [#allocation5], 8
        %v268 = vld [vmem:[%s267] sm:$0xff]
        %vm269 = vcmask 64512
        %v271 = vsel %vm269, %v268, 0
        %273 = vmatprep.subr.mxu0 0.0
        %274 = vmatpush1.msra.mxu0 %v257
        %275 = vmatprep.subr.mxu0 0.0
        %276 = vmatpush1.msra.mxu0 0.0
        %277 = vmatprep.subr.mxu0 0.0
        %278 = vmatpush1.msra.mxu0 0.0
        %279 = vmatprep.subr.mxu0 0.0
        %280 = vmatpush1.msra.mxu0 0.0
        %281 = vmatprep.subr.mxu0 0.0
        %282 = vmatpush1.msra.mxu0 0.0
        %283 = vmatprep.subr.mxu0 0.0
        %284 = vmatpush1.msra.mxu0 0.0
        %285 = vmatprep.subr.mxu0 0.0
        %286 = vmatpush1.msra.mxu0 0.0
        %287 = vmatprep.subr.mxu0 0.0
        %288 = vmatpush1.msra.mxu0 0.0
        %289 = vmatprep.subr.mxu0 0.0
        %290 = vmatpush1.msra.mxu0 0.0
        %291 = vmatprep.subr.mxu0 0.0
        %292 = vmatpush1.msra.mxu0 0.0
        %293 = vmatprep.subr.mxu0 0.0
        %294 = vmatpush1.msra.mxu0 0.0
        %295 = vmatprep.subr.mxu0 0.0
        %296 = vmatpush1.msra.mxu0 0.0
        %297 = vmatprep.subr.mxu0 0.0
        %298 = vmatpush1.msra.mxu0 0.0
        %299 = vmatprep.subr.mxu0 0.0
        %300 = vmatpush1.msra.mxu0 0.0
        %301 = vmatprep.subr.mxu0 0.0
        %302 = vmatpush1.msra.mxu0 0.0
        %303 = vmatprep.subr.mxu0 0.0
        %304 = vmatpush1.msra.mxu0 0.0
        %305 = vmatprep.subr.mxu0 0.0
        %306 = vmatpush1.msra.mxu0 0.0
        %307 = vmatprep.subr.mxu0 0.0
        %308 = vmatpush1.msra.mxu0 0.0
        %309 = vmatprep.subr.mxu0 0.0
        %310 = vmatpush1.msra.mxu0 0.0
        %311 = vmatprep.subr.mxu0 0.0
        %312 = vmatpush1.msra.mxu0 0.0
        %313 = vmatprep.subr.mxu0 0.0
        %314 = vmatpush1.msra.mxu0 0.0
        %315 = vmatprep.subr.mxu0 0.0
        %316 = vmatpush1.msra.mxu0 0.0
        %317 = vmatprep.subr.mxu0 0.0
        %318 = vmatpush1.msra.mxu0 0.0
        %319 = vmatprep.subr.mxu0 0.0
        %320 = vmatpush1.msra.mxu0 0.0
        %321 = vmatprep.subr.mxu0 0.0
        %322 = vmatpush1.msra.mxu0 0.0
        %323 = vmatprep.subr.mxu0 0.0
        %324 = vmatpush1.msra.mxu0 0.0
        %325 = vmatprep.subr.mxu0 0.0
        %326 = vmatpush1.msra.mxu0 0.0
        %327 = vmatprep.subr.mxu0 0.0
        %328 = vmatpush1.msra.mxu0 0.0
        %329 = vmatprep.subr.mxu0 0.0
        %330 = vmatpush1.msra.mxu0 0.0
        %331 = vmatprep.subr.mxu0 0.0
        %332 = vmatpush1.msra.mxu0 0.0
        %333 = vmatprep.subr.mxu0 0.0
        %334 = vmatpush1.msra.mxu0 0.0
        %335 = vmatprep.subr.mxu0 0.0
        %336 = vmatpush1.msra.mxu0 0.0
        %337 = vmatprep.mubr.f32.mxu0 0.0
        %338 = vmatmul.mubr.f32.gmra.mrb[0].mxu0 %v271
        %v339 = vpop.f32.mrb[0].mxu0
        %v340 = vadd.f32 0.0, %v339
        %v341 = vpop.f32.mrb[0].mxu0
        %342 = vdwg.mxu0
        %v344 = vsel %vm269, %v266, 0
        %346 = vmatprep.subr.mxu0 0.0
        %347 = vmatpush1.msra.mxu0 %v261
        %348 = vmatprep.subr.mxu0 0.0
        %349 = vmatpush1.msra.mxu0 0.0
        %350 = vmatprep.subr.mxu0 0.0
        %351 = vmatpush1.msra.mxu0 0.0
        %352 = vmatprep.subr.mxu0 0.0
        %353 = vmatpush1.msra.mxu0 0.0
        %354 = vmatprep.subr.mxu0 0.0
        %355 = vmatpush1.msra.mxu0 0.0
        %356 = vmatprep.subr.mxu0 0.0
        %357 = vmatpush1.msra.mxu0 0.0
        %358 = vmatprep.subr.mxu0 0.0
        %359 = vmatpush1.msra.mxu0 0.0
        %360 = vmatprep.subr.mxu0 0.0
        %361 = vmatpush1.msra.mxu0 0.0
        %362 = vmatprep.subr.mxu0 0.0
        %363 = vmatpush1.msra.mxu0 0.0
        %364 = vmatprep.subr.mxu0 0.0
        %365 = vmatpush1.msra.mxu0 0.0
        %366 = vmatprep.subr.mxu0 0.0
        %367 = vmatpush1.msra.mxu0 0.0
        %368 = vmatprep.subr.mxu0 0.0
        %369 = vmatpush1.msra.mxu0 0.0
        %370 = vmatprep.subr.mxu0 0.0
        %371 = vmatpush1.msra.mxu0 0.0
        %372 = vmatprep.subr.mxu0 0.0
        %373 = vmatpush1.msra.mxu0 0.0
        %374 = vmatprep.subr.mxu0 0.0
        %375 = vmatpush1.msra.mxu0 0.0
        %376 = vmatprep.subr.mxu0 0.0
        %377 = vmatpush1.msra.mxu0 0.0
        %378 = vmatprep.subr.mxu0 0.0
        %379 = vmatpush1.msra.mxu0 0.0
        %380 = vmatprep.subr.mxu0 0.0
        %381 = vmatpush1.msra.mxu0 0.0
        %382 = vmatprep.subr.mxu0 0.0
        %383 = vmatpush1.msra.mxu0 0.0
        %384 = vmatprep.subr.mxu0 0.0
        %385 = vmatpush1.msra.mxu0 0.0
        %386 = vmatprep.subr.mxu0 0.0
        %387 = vmatpush1.msra.mxu0 0.0
        %388 = vmatprep.subr.mxu0 0.0
        %389 = vmatpush1.msra.mxu0 0.0
        %390 = vmatprep.subr.mxu0 0.0
        %391 = vmatpush1.msra.mxu0 0.0
        %392 = vmatprep.subr.mxu0 0.0
        %393 = vmatpush1.msra.mxu0 0.0
        %394 = vmatprep.subr.mxu0 0.0
        %395 = vmatpush1.msra.mxu0 0.0
        %396 = vmatprep.subr.mxu0 0.0
        %397 = vmatpush1.msra.mxu0 0.0
        %398 = vmatprep.subr.mxu0 0.0
        %399 = vmatpush1.msra.mxu0 0.0
        %400 = vmatprep.subr.mxu0 0.0
        %401 = vmatpush1.msra.mxu0 0.0
        %402 = vmatprep.subr.mxu0 0.0
        %403 = vmatpush1.msra.mxu0 0.0
        %404 = vmatprep.subr.mxu0 0.0
        %405 = vmatpush1.msra.mxu0 0.0
        %406 = vmatprep.subr.mxu0 0.0
        %407 = vmatpush1.msra.mxu0 0.0
        %408 = vmatprep.subr.mxu0 0.0
        %409 = vmatpush1.msra.mxu0 0.0
        %410 = vmatprep.mubr.f32.mxu0 0.0
        %411 = vmatmul.mubr.f32.gmra.mrb[0].mxu0 %v344
        %v412 = vpop.f32.mrb[0].mxu0
        %v413 = vadd.f32 %v340, %v412
        %v414 = vpop.f32.mrb[0].mxu0
        %415 = vdwg.mxu0
        %s416 = scalar_lea.vmem [#allocation5], 16
        %v417 = vld [vmem:[%s416] sm:$0xff]
        %v419 = vsel %vm269, %v417, 0
        %421 = vmatprep.subr.mxu0 0.0
        %422 = vmatpush1.msra.mxu0 %v265
        %423 = vmatprep.subr.mxu0 0.0
        %424 = vmatpush1.msra.mxu0 0.0
        %425 = vmatprep.subr.mxu0 0.0
        %426 = vmatpush1.msra.mxu0 0.0
        %427 = vmatprep.subr.mxu0 0.0
        %428 = vmatpush1.msra.mxu0 0.0
        %429 = vmatprep.subr.mxu0 0.0
        %430 = vmatpush1.msra.mxu0 0.0
        %431 = vmatprep.subr.mxu0 0.0
        %432 = vmatpush1.msra.mxu0 0.0
        %433 = vmatprep.subr.mxu0 0.0
        %434 = vmatpush1.msra.mxu0 0.0
        %435 = vmatprep.subr.mxu0 0.0
        %436 = vmatpush1.msra.mxu0 0.0
        %437 = vmatprep.subr.mxu0 0.0
        %438 = vmatpush1.msra.mxu0 0.0
        %439 = vmatprep.subr.mxu0 0.0
        %440 = vmatpush1.msra.mxu0 0.0
        %441 = vmatprep.subr.mxu0 0.0
        %442 = vmatpush1.msra.mxu0 0.0
        %443 = vmatprep.subr.mxu0 0.0
        %444 = vmatpush1.msra.mxu0 0.0
        %445 = vmatprep.subr.mxu0 0.0
        %446 = vmatpush1.msra.mxu0 0.0
        %447 = vmatprep.subr.mxu0 0.0
        %448 = vmatpush1.msra.mxu0 0.0
        %449 = vmatprep.subr.mxu0 0.0
        %450 = vmatpush1.msra.mxu0 0.0
        %451 = vmatprep.subr.mxu0 0.0
        %452 = vmatpush1.msra.mxu0 0.0
        %453 = vmatprep.subr.mxu0 0.0
        %454 = vmatpush1.msra.mxu0 0.0
        %455 = vmatprep.subr.mxu0 0.0
        %456 = vmatpush1.msra.mxu0 0.0
        %457 = vmatprep.subr.mxu0 0.0
        %458 = vmatpush1.msra.mxu0 0.0
        %459 = vmatprep.subr.mxu0 0.0
        %460 = vmatpush1.msra.mxu0 0.0
        %461 = vmatprep.subr.mxu0 0.0
        %462 = vmatpush1.msra.mxu0 0.0
        %463 = vmatprep.subr.mxu0 0.0
        %464 = vmatpush1.msra.mxu0 0.0
        %465 = vmatprep.subr.mxu0 0.0
        %466 = vmatpush1.msra.mxu0 0.0
        %467 = vmatprep.subr.mxu0 0.0
        %468 = vmatpush1.msra.mxu0 0.0
        %469 = vmatprep.subr.mxu0 0.0
        %470 = vmatpush1.msra.mxu0 0.0
        %471 = vmatprep.subr.mxu0 0.0
        %472 = vmatpush1.msra.mxu0 0.0
        %473 = vmatprep.subr.mxu0 0.0
        %474 = vmatpush1.msra.mxu0 0.0
        %475 = vmatprep.subr.mxu0 0.0
        %476 = vmatpush1.msra.mxu0 0.0
        %477 = vmatprep.subr.mxu0 0.0
        %478 = vmatpush1.msra.mxu0 0.0
        %479 = vmatprep.subr.mxu0 0.0
        %480 = vmatpush1.msra.mxu0 0.0
        %481 = vmatprep.subr.mxu0 0.0
        %482 = vmatpush1.msra.mxu0 0.0
        %483 = vmatprep.subr.mxu0 0.0
        %484 = vmatpush1.msra.mxu0 0.0
        %485 = vmatprep.mubr.f32.mxu0 0.0
        %486 = vmatmul.mubr.f32.gmra.mrb[0].mxu0 %v419
        %v487 = vpop.f32.mrb[0].mxu0
        %v488 = vadd.f32 0.0, %v487
        %v489 = vpop.f32.mrb[0].mxu0
        %490 = vdwg.mxu0
        %v491 = vadd.f32 %v413, %v488
        %v492 = vld [vmem:[%s2] sm:$0xff]
        %494 = vset.pattern.permute.xlu0 0
        %495 = vperm.xlu0 %494, %v492
        %v496 = vpop.permute.xlu0 %495
        %v498 = vadd.f32 %v491, %v496
        %v499 = vmax.f32 %v498, 0.0
        %500 = vrot.lane.b32.xlu0 %v499, 1
        %v501 = vpop.permute.xlu0 %500
        %v502 = vsel %vm258, 0.0, %v501
        %503 = vrot.lane.b32.xlu0 %v499, 127
        %v504 = vpop.permute.xlu0 %503
        %v505 = vsel %vm262, 0.0, %v504
        %v506 = vld [vmem:[%s3] sm:$0xff]
        %s507 = scalar_lea.vmem %s3, 8
        %v508 = vld [vmem:[%s507] sm:$0xff]
        %v510 = vsel %vm269, %v508, 0
        %512 = vmatprep.subr.mxu0 0.0
        %513 = vmatpush1.msra.mxu0 %v499
        %514 = vmatprep.subr.mxu0 0.0
        %515 = vmatpush1.msra.mxu0 0.0
        %516 = vmatprep.subr.mxu0 0.0
        %517 = vmatpush1.msra.mxu0 0.0
        %518 = vmatprep.subr.mxu0 0.0
        %519 = vmatpush1.msra.mxu0 0.0
        %520 = vmatprep.subr.mxu0 0.0
        %521 = vmatpush1.msra.mxu0 0.0
        %522 = vmatprep.subr.mxu0 0.0
        %523 = vmatpush1.msra.mxu0 0.0
        %524 = vmatprep.subr.mxu0 0.0
        %525 = vmatpush1.msra.mxu0 0.0
        %526 = vmatprep.subr.mxu0 0.0
        %527 = vmatpush1.msra.mxu0 0.0
        %528 = vmatprep.subr.mxu0 0.0
        %529 = vmatpush1.msra.mxu0 0.0
        %530 = vmatprep.subr.mxu0 0.0
        %531 = vmatpush1.msra.mxu0 0.0
        %532 = vmatprep.subr.mxu0 0.0
        %533 = vmatpush1.msra.mxu0 0.0
        %534 = vmatprep.subr.mxu0 0.0
        %535 = vmatpush1.msra.mxu0 0.0
        %536 = vmatprep.subr.mxu0 0.0
        %537 = vmatpush1.msra.mxu0 0.0
        %538 = vmatprep.subr.mxu0 0.0
        %539 = vmatpush1.msra.mxu0 0.0
        %540 = vmatprep.subr.mxu0 0.0
        %541 = vmatpush1.msra.mxu0 0.0
        %542 = vmatprep.subr.mxu0 0.0
        %543 = vmatpush1.msra.mxu0 0.0
        %544 = vmatprep.subr.mxu0 0.0
        %545 = vmatpush1.msra.mxu0 0.0
        %546 = vmatprep.subr.mxu0 0.0
        %547 = vmatpush1.msra.mxu0 0.0
        %548 = vmatprep.subr.mxu0 0.0
        %549 = vmatpush1.msra.mxu0 0.0
        %550 = vmatprep.subr.mxu0 0.0
        %551 = vmatpush1.msra.mxu0 0.0
        %552 = vmatprep.subr.mxu0 0.0
        %553 = vmatpush1.msra.mxu0 0.0
        %554 = vmatprep.subr.mxu0 0.0
        %555 = vmatpush1.msra.mxu0 0.0
        %556 = vmatprep.subr.mxu0 0.0
        %557 = vmatpush1.msra.mxu0 0.0
        %558 = vmatprep.subr.mxu0 0.0
        %559 = vmatpush1.msra.mxu0 0.0
        %560 = vmatprep.subr.mxu0 0.0
        %561 = vmatpush1.msra.mxu0 0.0
        %562 = vmatprep.subr.mxu0 0.0
        %563 = vmatpush1.msra.mxu0 0.0
        %564 = vmatprep.subr.mxu0 0.0
        %565 = vmatpush1.msra.mxu0 0.0
        %566 = vmatprep.subr.mxu0 0.0
        %567 = vmatpush1.msra.mxu0 0.0
        %568 = vmatprep.subr.mxu0 0.0
        %569 = vmatpush1.msra.mxu0 0.0
        %570 = vmatprep.subr.mxu0 0.0
        %571 = vmatpush1.msra.mxu0 0.0
        %572 = vmatprep.subr.mxu0 0.0
        %573 = vmatpush1.msra.mxu0 0.0
        %574 = vmatprep.subr.mxu0 0.0
        %575 = vmatpush1.msra.mxu0 0.0
        %576 = vmatprep.mubr.f32.mxu0 0.0
        %577 = vmatmul.mubr.f32.gmra.mrb[0].mxu0 %v510
        %v578 = vpop.f32.mrb[0].mxu0
        %v579 = vadd.f32 0.0, %v578
        %v580 = vpop.f32.mrb[0].mxu0
        %581 = vdwg.mxu0
        %v583 = vsel %vm269, %v506, 0
        %585 = vmatprep.subr.mxu0 0.0
        %586 = vmatpush1.msra.mxu0 %v502
        %587 = vmatprep.subr.mxu0 0.0
        %588 = vmatpush1.msra.mxu0 0.0
        %589 = vmatprep.subr.mxu0 0.0
        %590 = vmatpush1.msra.mxu0 0.0
        %591 = vmatprep.subr.mxu0 0.0
        %592 = vmatpush1.msra.mxu0 0.0
        %593 = vmatprep.subr.mxu0 0.0
        %594 = vmatpush1.msra.mxu0 0.0
        %595 = vmatprep.subr.mxu0 0.0
        %596 = vmatpush1.msra.mxu0 0.0
        %597 = vmatprep.subr.mxu0 0.0
        %598 = vmatpush1.msra.mxu0 0.0
        %599 = vmatprep.subr.mxu0 0.0
        %600 = vmatpush1.msra.mxu0 0.0
        %601 = vmatprep.subr.mxu0 0.0
        %602 = vmatpush1.msra.mxu0 0.0
        %603 = vmatprep.subr.mxu0 0.0
        %604 = vmatpush1.msra.mxu0 0.0
        %605 = vmatprep.subr.mxu0 0.0
        %606 = vmatpush1.msra.mxu0 0.0
        %607 = vmatprep.subr.mxu0 0.0
        %608 = vmatpush1.msra.mxu0 0.0
        %609 = vmatprep.subr.mxu0 0.0
        %610 = vmatpush1.msra.mxu0 0.0
        %611 = vmatprep.subr.mxu0 0.0
        %612 = vmatpush1.msra.mxu0 0.0
        %613 = vmatprep.subr.mxu0 0.0
        %614 = vmatpush1.msra.mxu0 0.0
        %615 = vmatprep.subr.mxu0 0.0
        %616 = vmatpush1.msra.mxu0 0.0
        %617 = vmatprep.subr.mxu0 0.0
        %618 = vmatpush1.msra.mxu0 0.0
        %619 = vmatprep.subr.mxu0 0.0
        %620 = vmatpush1.msra.mxu0 0.0
        %621 = vmatprep.subr.mxu0 0.0
        %622 = vmatpush1.msra.mxu0 0.0
        %623 = vmatprep.subr.mxu0 0.0
        %624 = vmatpush1.msra.mxu0 0.0
        %625 = vmatprep.subr.mxu0 0.0
        %626 = vmatpush1.msra.mxu0 0.0
        %627 = vmatprep.subr.mxu0 0.0
        %628 = vmatpush1.msra.mxu0 0.0
        %629 = vmatprep.subr.mxu0 0.0
        %630 = vmatpush1.msra.mxu0 0.0
        %631 = vmatprep.subr.mxu0 0.0
        %632 = vmatpush1.msra.mxu0 0.0
        %633 = vmatprep.subr.mxu0 0.0
        %634 = vmatpush1.msra.mxu0 0.0
        %635 = vmatprep.subr.mxu0 0.0
        %636 = vmatpush1.msra.mxu0 0.0
        %637 = vmatprep.subr.mxu0 0.0
        %638 = vmatpush1.msra.mxu0 0.0
        %639 = vmatprep.subr.mxu0 0.0
        %640 = vmatpush1.msra.mxu0 0.0
        %641 = vmatprep.subr.mxu0 0.0
        %642 = vmatpush1.msra.mxu0 0.0
        %643 = vmatprep.subr.mxu0 0.0
        %644 = vmatpush1.msra.mxu0 0.0
        %645 = vmatprep.subr.mxu0 0.0
        %646 = vmatpush1.msra.mxu0 0.0
        %647 = vmatprep.subr.mxu0 0.0
        %648 = vmatpush1.msra.mxu0 0.0
        %649 = vmatprep.mubr.f32.mxu0 0.0
        %650 = vmatmul.mubr.f32.gmra.mrb[0].mxu0 %v583
        %v651 = vpop.f32.mrb[0].mxu0
        %v652 = vadd.f32 %v579, %v651
        %v653 = vpop.f32.mrb[0].mxu0
        %654 = vdwg.mxu0
        %s655 = scalar_lea.vmem %s3, 16
        %v656 = vld [vmem:[%s655] sm:$0xff]
        %v658 = vsel %vm269, %v656, 0
        %660 = vmatprep.subr.mxu0 0.0
        %661 = vmatpush1.msra.mxu0 %v505
        %662 = vmatprep.subr.mxu0 0.0
        %663 = vmatpush1.msra.mxu0 0.0
        %664 = vmatprep.subr.mxu0 0.0
        %665 = vmatpush1.msra.mxu0 0.0
        %666 = vmatprep.subr.mxu0 0.0
        %667 = vmatpush1.msra.mxu0 0.0
        %668 = vmatprep.subr.mxu0 0.0
        %669 = vmatpush1.msra.mxu0 0.0
        %670 = vmatprep.subr.mxu0 0.0
        %671 = vmatpush1.msra.mxu0 0.0
        %672 = vmatprep.subr.mxu0 0.0
        %673 = vmatpush1.msra.mxu0 0.0
        %674 = vmatprep.subr.mxu0 0.0
        %675 = vmatpush1.msra.mxu0 0.0
        %676 = vmatprep.subr.mxu0 0.0
        %677 = vmatpush1.msra.mxu0 0.0
        %678 = vmatprep.subr.mxu0 0.0
        %679 = vmatpush1.msra.mxu0 0.0
        %680 = vmatprep.subr.mxu0 0.0
        %681 = vmatpush1.msra.mxu0 0.0
        %682 = vmatprep.subr.mxu0 0.0
        %683 = vmatpush1.msra.mxu0 0.0
        %684 = vmatprep.subr.mxu0 0.0
        %685 = vmatpush1.msra.mxu0 0.0
        %686 = vmatprep.subr.mxu0 0.0
        %687 = vmatpush1.msra.mxu0 0.0
        %688 = vmatprep.subr.mxu0 0.0
        %689 = vmatpush1.msra.mxu0 0.0
        %690 = vmatprep.subr.mxu0 0.0
        %691 = vmatpush1.msra.mxu0 0.0
        %692 = vmatprep.subr.mxu0 0.0
        %693 = vmatpush1.msra.mxu0 0.0
        %694 = vmatprep.subr.mxu0 0.0
        %695 = vmatpush1.msra.mxu0 0.0
        %696 = vmatprep.subr.mxu0 0.0
        %697 = vmatpush1.msra.mxu0 0.0
        %698 = vmatprep.subr.mxu0 0.0
        %699 = vmatpush1.msra.mxu0 0.0
        %700 = vmatprep.subr.mxu0 0.0
        %701 = vmatpush1.msra.mxu0 0.0
        %702 = vmatprep.subr.mxu0 0.0
        %703 = vmatpush1.msra.mxu0 0.0
        %704 = vmatprep.subr.mxu0 0.0
        %705 = vmatpush1.msra.mxu0 0.0
        %706 = vmatprep.subr.mxu0 0.0
        %707 = vmatpush1.msra.mxu0 0.0
        %708 = vmatprep.subr.mxu0 0.0
        %709 = vmatpush1.msra.mxu0 0.0
        %710 = vmatprep.subr.mxu0 0.0
        %711 = vmatpush1.msra.mxu0 0.0
        %712 = vmatprep.subr.mxu0 0.0
        %713 = vmatpush1.msra.mxu0 0.0
        %714 = vmatprep.subr.mxu0 0.0
        %715 = vmatpush1.msra.mxu0 0.0
        %716 = vmatprep.subr.mxu0 0.0
        %717 = vmatpush1.msra.mxu0 0.0
        %718 = vmatprep.subr.mxu0 0.0
        %719 = vmatpush1.msra.mxu0 0.0
        %720 = vmatprep.subr.mxu0 0.0
        %721 = vmatpush1.msra.mxu0 0.0
        %722 = vmatprep.subr.mxu0 0.0
        %723 = vmatpush1.msra.mxu0 0.0
        %724 = vmatprep.mubr.f32.mxu0 0.0
        %725 = vmatmul.mubr.f32.gmra.mrb[0].mxu0 %v658
        %v726 = vpop.f32.mrb[0].mxu0
        %v727 = vadd.f32 0.0, %v726
        %v728 = vpop.f32.mrb[0].mxu0
        %729 = vdwg.mxu0
        %v730 = vadd.f32 %v652, %v727
        %v731 = vld [vmem:[%s4] sm:$0xff]
        %733 = vset.pattern.permute.xlu0 0
        %734 = vperm.xlu0 %733, %v731
        %v735 = vpop.permute.xlu0 %734
        %v737 = vadd.f32 %v730, %v735
        %v738 = vmax.f32 %v737, 0.0
        %v739 = vadd.f32 %v738, %v257
        %740 = vst [vmem:[%s254] sm:$0xff] %v739
        %s741 = sand.u32 %s141, 1
        %s742 = scalar_lea.sflag [#allocation4], %s741
        %s743 = sand.u32 %s141, 1
        %s744 = smul.addr %s743, 8
        %s745 = scalar_lea.vmem [#allocation7], %s744
        // Predicated region
        $region49: #{tpu_custom_call.1} parent=39 // pred_check
          %p746 = pneg %p151
        $region50: #{tpu_custom_call.1} parent=39 // pred_check_branch
          %748 = sbr.rel (%p746) target = $region52
        $region51: #{tpu_custom_call.1} parent=39 // pred_region
          %s750 = ssub.s32 128, 128
          %751 = vsyncadd %s742, %s750
          %s752 = smul.addr %s23, 128
          %s753 = scalar_lea.hbm %s5, %s752
          %s755 = sshll.u32 %s745, 4
          %s756 = int_to_ptr.vmem [resolvable:$true] %s755
          %758 = dma.vmem_to_hbm [thread:$0]  %s756, 128, %s753, %s742
        $region52: #{tpu_custom_call.1} parent=39 // pred_fallthru
          _
      $region40: #{tpu_custom_call.1} parent=5 // pred_fallthru
        _
      %p759 = scmp.le.s32.totalorder 2, %s18
      // Predicated region
      $region53: #{tpu_custom_call.1} parent=5 // pred_check
        %p760 = pneg %p759
      $region54: #{tpu_custom_call.1} parent=5 // pred_check_branch
        %762 = sbr.rel (%p760) target = $region56
      $region55: #{tpu_custom_call.1} parent=5 // pred_region
        %s763 = ssub.s32 %s18, 2
        // Predicated region
        $region57: #{tpu_custom_call.1} parent=55 // pred_check
          %p764 = pneg %p157
        $region58: #{tpu_custom_call.1} parent=55 // pred_check_branch
          %766 = sbr.rel (%p764) target = $region60
        $region59: #{tpu_custom_call.1} parent=55 // pred_region
          %s767 = sand.u32 %s142, 1
          %s768 = scalar_lea.sflag [#allocation4], %s767
          %s769 = sand.u32 %s142, 1
          %s770 = smul.addr %s769, 8
          %s771 = scalar_lea.vmem [#allocation7], %s770
          %772 = dma.done %s768, 128
        $region60: #{tpu_custom_call.1} parent=55 // pred_fallthru
          _
      $region56: #{tpu_custom_call.1} parent=5 // pred_fallthru
        _
    $region6: #{tpu_custom_call.1} parent=1 // loop_footer
      %s22 = sadd.s32 1, %s18
    $region7: #{tpu_custom_call.1} parent=1 // loop_footer_branch
      %17 = sbr.rel target = $region3
    $region8: #{tpu_custom_call.1} parent=1 // loop_exit
      _
    %773 = vsyncpa [#allocation3], 1
    %s774 = scalar_lea.sflag [#allocation3], 1
    %775 = vsyncpa %s774, 1
    %776 = vsyncpa [#allocation6], 1
    %777 = vsyncpa [#allocation4], 1
    %s778 = scalar_lea.sflag [#allocation4], 1
    %779 = vsyncpa %s778, 1

</llo_original>
